<compile_context>
chip_gen: v5e
topology: v5e:2x2
jax: 0.10.0
libtpu: 0.0.40
codegen_flags: <defaults>
</compile_context>

<pallas_src>
import functools

import jax
import jax.numpy as jnp
from jax import lax
from jax.experimental import pallas as pl
from jax.experimental.pallas import tpu as pltpu


def _epilogue(scale, feat_f32, txt_ref, out_ref):
    """L2 normalize + logit scale -> txt matmul -> exact softmax (per batch tile)."""
    # F.normalize(feat, dim=-1) fused with logit_scale.exp():
    #   feat / max(||feat||, 1e-12) * scale == feat * (scale * rsqrt(max(sumsq, 1e-24)))
    sumsq = jnp.sum(feat_f32 * feat_f32, axis=-1, keepdims=True)
    inv = scale * lax.rsqrt(jnp.maximum(sumsq, 1e-24))          # EUP rsqrt
    feat_n = (feat_f32 * inv).astype(txt_ref.dtype)             # bf16 for the MXU

    # logits = scale * feat_n @ txt_embeddings -> (TB, C), f32 accumulate.
    logits = jnp.dot(feat_n, txt_ref[...], preferred_element_type=jnp.float32)

    # Numerically stable softmax over classes. Exact divide: this runs once per
    # batch tile, so the VPU cost is negligible and rows sum to 1 tightly.
    m = jnp.max(logits, axis=-1, keepdims=True)
    e = jnp.exp(logits - m)
    out_ref[...] = e / jnp.sum(e, axis=-1, keepdims=True)


def _fused_kernel(scale_ref, x_ref, w_enc_ref, txt_ref, out_ref):
    """1-D grid over batch tiles; full F contraction in one MXU call.

    scale_ref : SMEM (1,)        exp(logit_scale), scalar-prefetched
    x_ref     : VMEM (TB, F)     f32 flattened-image tile (cast fused in-kernel)
    w_enc_ref : VMEM (F, D)      bf16 synthetic encoder projection (resident)
    txt_ref   : VMEM (D, C)      bf16 text embeddings (resident)
    out_ref   : VMEM (TB, C)     f32 softmax probabilities
    """
    x_bf16 = x_ref[...].astype(jnp.bfloat16)
    feat = jnp.dot(x_bf16, w_enc_ref[...], preferred_element_type=jnp.float32)
    _epilogue(scale_ref[0], feat, txt_ref, out_ref)


def _tiled_kernel(scale_ref, x_ref, w_enc_ref, txt_ref, out_ref, acc_ref):
    """2-D grid (batch tiles x F tiles) for encoders whose weights exceed VMEM.

    x_ref     : VMEM (TB, TK) f32,  w_enc_ref : VMEM (TK, D) bf16
    acc_ref   : VMEM (TB, D) f32 feature accumulator scratch
    """
    k = pl.program_id(1)

    @pl.when(k == 0)
    def _():
        acc_ref[...] = jnp.zeros_like(acc_ref)

    acc_ref[...] += jnp.dot(
        x_ref[...].astype(jnp.bfloat16), w_enc_ref[...],
        preferred_element_type=jnp.float32,
    )

    @pl.when(k == pl.num_programs(1) - 1)
    def _():
        _epilogue(scale_ref[0], acc_ref[...], txt_ref, out_ref)


def _pick_tile(dim, candidates):
    """Largest candidate that divides `dim`, else the full dimension."""
    for c in candidates:
        if c <= dim and dim % c == 0:
            return c
    return dim


# Worst case: every block double-buffered by the pipeline.
def _fused_vmem_bytes(tb, f, d, c):
    return 2 * (tb * f * 4 + f * d * 2 + d * c * 2 + tb * c * 4)


_FUSED_VMEM_BUDGET = 24 * 1024 * 1024   # comfortably under the 32 MiB scoped default


@functools.partial(jax.jit, static_argnames=("tb", "tk"))
def base_classifier_forward(x_nchw, w_enc, txt_emb, logit_scale, *, tb=None, tk=None):
    """x_nchw: (B, C, H, W) float32 -> (B, num_classes) float32 probabilities."""
    B = x_nchw.shape[0]
    # Row-major flatten like torch.flatten; keep f32 — bf16 cast is fused in-kernel.
    x_flat = x_nchw.reshape(B, -1)
    F_dim = x_flat.shape[1]
    D = w_enc.shape[1]
    C = txt_emb.shape[1]

    # Weight streams cast to bf16 once (MXU-native, half HBM).
    w_bf16 = w_enc.astype(jnp.bfloat16)
    txt_bf16 = txt_emb.astype(jnp.bfloat16)
    scale = jnp.exp(logit_scale).reshape(1).astype(jnp.float32)

    # ---- batch tile ---------------------------------------------------------
    if tb is None:
        TB = _pick_tile(B, (256, 128, 64, 32, 16, 8))
        # Keep >= 2 batch tiles when possible so the "parallel" batch axis has
        # work for both TensorCores on v7x (harmless on single-TC v5e/v6e).
        if B // TB < 2 and TB >= 16 and TB % 2 == 0:
            TB //= 2
    else:
        TB = tb
    if B % TB != 0:
        raise ValueError(f"batch tile {TB} must divide batch {B}")

    vmem_limit = 32 * 1024 * 1024   # safe on v5e/v6e (128 MiB) and v7x (64 MiB)

    # ---- fused path: collapse the contraction axis when w_enc fits VMEM -----
    if tk is None and _fused_vmem_bytes(TB, F_dim, D, C) <= _FUSED_VMEM_BUDGET:
        return pl.pallas_call(
            _fused_kernel,
            out_shape=jax.ShapeDtypeStruct((B, C), jnp.float32),
            grid_spec=pltpu.PrefetchScalarGridSpec(
                num_scalar_prefetch=1,                       # scale lands in SMEM
                grid=(B // TB,),
                in_specs=[
                    pl.BlockSpec((TB, F_dim), lambda i, s: (i, 0)),  # x tile (f32)
                    pl.BlockSpec((F_dim, D), lambda i, s: (0, 0)),   # w_enc resident
                    pl.BlockSpec((D, C), lambda i, s: (0, 0)),       # txt resident
                ],
                out_specs=pl.BlockSpec((TB, C), lambda i, s: (i, 0)),
            ),
            compiler_params=pltpu.CompilerParams(
                dimension_semantics=("parallel",),           # megacore on v7x
                vmem_limit_bytes=vmem_limit,
            ),
        )(scale, x_flat, w_bf16, txt_bf16)

    # ---- streamed-K path: ViT-scale feature dims ----------------------------
    TK = tk if tk is not None else _pick_tile(F_dim, (4096, 2048, 1024, 512, 256, 128))
    if F_dim % TK != 0:
        raise ValueError(f"contraction tile {TK} must divide feature dim {F_dim}")

    return pl.pallas_call(
        _tiled_kernel,
        out_shape=jax.ShapeDtypeStruct((B, C), jnp.float32),
        grid_spec=pltpu.PrefetchScalarGridSpec(
            num_scalar_prefetch=1,
            grid=(B // TB, F_dim // TK),
            in_specs=[
                pl.BlockSpec((TB, TK), lambda i, k, s: (i, k)),   # x tile (f32)
                pl.BlockSpec((TK, D), lambda i, k, s: (k, 0)),    # w_enc tile
                pl.BlockSpec((D, C), lambda i, k, s: (0, 0)),     # txt (resident)
            ],
            out_specs=pl.BlockSpec((TB, C), lambda i, k, s: (i, 0)),
            scratch_shapes=[pltpu.VMEM((TB, D), jnp.float32)],    # feature acc
        ),
        compiler_params=pltpu.CompilerParams(
            dimension_semantics=("parallel", "arbitrary"),
            vmem_limit_bytes=vmem_limit,
        ),
    )(scale, x_flat, w_bf16, txt_bf16)


def _reference(x_nchw, w_enc, txt_emb, logit_scale):
    """Pure-JAX f32 reference mirroring the PyTorch forward."""
    B = x_nchw.shape[0]
    feat = x_nchw.reshape(B, -1) @ w_enc
    norm = jnp.sqrt(jnp.sum(feat * feat, axis=-1, keepdims=True))
    feat = feat / jnp.maximum(norm, 1e-12)
    logits = jnp.exp(logit_scale) * (feat @ txt_emb)
    return jax.nn.softmax(logits, axis=1)


if __name__ == "__main__":
    # Geometry-friendly small shapes: batch multiple of 16, D/C multiples of 128
    # (lane-dense), F a multiple of 128.
    B, C_in, H, W = 32, 3, 32, 32          # input images (NCHW)
    D = 128                                # embedding dim
    NUM_CLASSES = 256                      # text-embedding columns
    F_dim = C_in * H * W                   # 3072

    key = jax.random.PRNGKey(0)
    k_x, k_w, k_t = jax.random.split(key, 3)

    x = jax.random.normal(k_x, (B, C_in, H, W), dtype=jnp.float32)
    # Deterministic synthetic parameters (stand-ins for pretrained weights).
    w_enc = jax.random.normal(k_w, (F_dim, D), dtype=jnp.float32) * 0.02
    txt_emb = jax.random.normal(k_t, (D, NUM_CLASSES), dtype=jnp.float32)
    txt_emb = txt_emb / jnp.linalg.norm(txt_emb, axis=0, keepdims=True)
    logit_scale = jnp.float32(jnp.log(1.0 / 0.07))   # CLIP init: exp() ~= 14.29

    # Default (fused) path: 1-D grid over 2 batch tiles of 16, w_enc resident.
    probs = base_classifier_forward(x, w_enc, txt_emb, logit_scale)
    probs = jax.block_until_ready(probs)

    ref = _reference(x, w_enc, txt_emb, logit_scale)
    assert probs.shape == (B, NUM_CLASSES)
    # Exact softmax divide -> rows sum tightly to 1.
    assert jnp.allclose(jnp.sum(probs, axis=1), 1.0, atol=1e-4)
    # bf16 matmul operands -> compare with loosened tolerance vs f32 reference.
    assert jnp.allclose(probs, ref, atol=2e-2, rtol=2e-2)

    # Also exercise the streamed-K path (used for ViT-scale feature dims).
    probs_tiled = base_classifier_forward(x, w_enc, txt_emb, logit_scale, tb=16, tk=1024)
    probs_tiled = jax.block_until_ready(probs_tiled)
    assert jnp.allclose(probs_tiled, ref, atol=2e-2, rtol=2e-2)

    print("KERNEL_OK")
</pallas_src>

<mosaic_0001>
module attributes {stable_mosaic.version = 11 : i64} {
  func.func @_fused_kernel(%arg0: i32, %arg1: memref<1xf32, #tpu.memory_space<smem>>, %arg2: memref<16x3072xf32, #tpu.memory_space<vmem>>, %arg3: memref<3072x128xbf16, #tpu.memory_space<vmem>>, %arg4: memref<128x256xbf16, #tpu.memory_space<vmem>>, %arg5: memref<16x256xf32, #tpu.memory_space<vmem>>) attributes {dimension_semantics = [#tpu.dimension_semantics<parallel>], iteration_bounds = array<i64: 2>, scalar_prefetch = 1 : i64, scratch_operands = 0 : i64, tpu.core_type = #tpu.core_type<tc>, window_params = [{transform_indices = @transform_0, window_bounds = array<i64: 16, 3072>}, {pipeline_mode = #tpu.pipeline_mode<synchronous>, transform_indices = @transform_1, window_bounds = array<i64: 3072, 128>}, {pipeline_mode = #tpu.pipeline_mode<synchronous>, transform_indices = @transform_2, window_bounds = array<i64: 128, 256>}, {transform_indices = @transform_3, window_bounds = array<i64: 16, 256>}]} {
    %c0 = arith.constant 0 : index
    %c0_0 = arith.constant 0 : index
    %0 = vector.load %arg2[%c0, %c0_0] : memref<16x3072xf32, #tpu.memory_space<vmem>>, vector<16x3072xf32>
    %1 = arith.truncf %0 : vector<16x3072xf32> to vector<16x3072xbf16>
    %c0_1 = arith.constant 0 : index
    %c0_2 = arith.constant 0 : index
    %2 = vector.load %arg3[%c0_1, %c0_2] : memref<3072x128xbf16, #tpu.memory_space<vmem>>, vector<3072x128xbf16>
    %cst = arith.constant dense<0.000000e+00> : vector<16x128xf32>
    %3 = tpu.matmul %1, %2, %cst {dimension_numbers = #tpu.dot_dimension_numbers<[1], [0], [0], [1], [0, 0, 1, 1], [], []>} : vector<16x3072xbf16>, vector<3072x128xbf16>, vector<16x128xf32> -> vector<16x128xf32>
    %c0_3 = arith.constant 0 : index
    %4 = memref.load %arg1[%c0_3] : memref<1xf32, #tpu.memory_space<smem>>
    %5 = arith.mulf %3, %3 : vector<16x128xf32>
    %cst_4 = arith.constant dense<0.000000e+00> : vector<16xf32>
    %6 = vector.multi_reduction <add>, %5, %cst_4 [1] : vector<16x128xf32> to vector<16xf32>
    %7 = vector.shape_cast %6 : vector<16xf32> to vector<16x1xf32>
    %cst_5 = arith.constant 1.000000e-24 : f32
    %8 = vector.broadcast %cst_5 : f32 to vector<16x1xf32>
    %9 = arith.maximumf %7, %8 : vector<16x1xf32>
    %10 = math.rsqrt %9 : vector<16x1xf32>
    %11 = vector.broadcast %4 : f32 to vector<16x1xf32>
    %12 = arith.mulf %11, %10 : vector<16x1xf32>
    %13 = vector.broadcast %12 : vector<16x1xf32> to vector<16x128xf32>
    %14 = arith.mulf %3, %13 : vector<16x128xf32>
    %15 = arith.truncf %14 : vector<16x128xf32> to vector<16x128xbf16>
    %c0_6 = arith.constant 0 : index
    %c0_7 = arith.constant 0 : index
    %16 = vector.load %arg4[%c0_6, %c0_7] : memref<128x256xbf16, #tpu.memory_space<vmem>>, vector<128x256xbf16>
    %cst_8 = arith.constant dense<0.000000e+00> : vector<16x256xf32>
    %17 = tpu.matmul %15, %16, %cst_8 {dimension_numbers = #tpu.dot_dimension_numbers<[1], [0], [0], [1], [0, 0, 1, 1], [], []>} : vector<16x128xbf16>, vector<128x256xbf16>, vector<16x256xf32> -> vector<16x256xf32>
    %cst_9 = arith.constant dense<0xFF800000> : vector<16xf32>
    %18 = vector.multi_reduction <maximumf>, %17, %cst_9 [1] : vector<16x256xf32> to vector<16xf32>
    %19 = vector.shape_cast %18 : vector<16xf32> to vector<16x1xf32>
    %20 = vector.broadcast %19 : vector<16x1xf32> to vector<16x256xf32>
    %21 = arith.subf %17, %20 : vector<16x256xf32>
    %22 = math.exp %21 : vector<16x256xf32>
    %cst_10 = arith.constant dense<0.000000e+00> : vector<16xf32>
    %23 = vector.multi_reduction <add>, %22, %cst_10 [1] : vector<16x256xf32> to vector<16xf32>
    %24 = vector.shape_cast %23 : vector<16xf32> to vector<16x1xf32>
    %25 = vector.broadcast %24 : vector<16x1xf32> to vector<16x256xf32>
    %26 = arith.divf %22, %25 : vector<16x256xf32>
    %c0_11 = arith.constant 0 : index
    %c0_12 = arith.constant 0 : index
    %27 = vector.load %arg5[%c0_11, %c0_12] : memref<16x256xf32, #tpu.memory_space<vmem>>, vector<16x256xf32>
    tpu.vector_store %arg5[%c0_11, %c0_12], %26 {strides = array<i32>} : memref<16x256xf32, #tpu.memory_space<vmem>>, vector<16x256xf32>,
    return
  }
  func.func @transform_0(%arg0: i32, %arg1: memref<1xf32, #tpu.memory_space<smem>>) -> (i32, i32) {
    %c0_i32 = arith.constant 0 : i32
    %c0_i32_0 = arith.constant 0 : i32
    return %arg0, %c0_i32 : i32, i32
  }
  func.func @transform_1(%arg0: i32, %arg1: memref<1xf32, #tpu.memory_space<smem>>) -> (i32, i32) {
    %c0_i32 = arith.constant 0 : i32
    %c0_i32_0 = arith.constant 0 : i32
    %c0_i32_1 = arith.constant 0 : i32
    return %c0_i32, %c0_i32_0 : i32, i32
  }
  func.func @transform_2(%arg0: i32, %arg1: memref<1xf32, #tpu.memory_space<smem>>) -> (i32, i32) {
    %c0_i32 = arith.constant 0 : i32
    %c0_i32_0 = arith.constant 0 : i32
    %c0_i32_1 = arith.constant 0 : i32
    return %c0_i32, %c0_i32_0 : i32, i32
  }
  func.func @transform_3(%arg0: i32, %arg1: memref<1xf32, #tpu.memory_space<smem>>) -> (i32, i32) {
    %c0_i32 = arith.constant 0 : i32
    %c0_i32_0 = arith.constant 0 : i32
    return %arg0, %c0_i32 : i32, i32
  }
}

</mosaic_0001>

<llo_original>
// kernel: base_classifier_forward.1
$region0: #{base_classifier_forward.1}
  #allocation0 [shape = 'u32[]', space=smem, size = 0x4, offset = 0x4, fixed_abs, tag = 'smem constant byte address 0x4 - core index']
  #allocation1 [shape = 'u32[72,128]{1,0:T(1,128)}', space=vmem, size = 0x9000, scoped, tag = 'internal scratch']
  #allocation2 [shape = 's32[1]{0}', space=sflag, size = 0x4, scoped, tag = 'scoped memory for base_classifier_forward.1']
  #allocation3 [shape = 'f32[1]{0:T(128)S(6)}', space=smem, size = 0x200, scoped, tag = 'prefetched SMEM operand 0']
  %s0 = inlined_call_operand.<no memory space> [shape: f32[1], index: 0, kind: input, shape index: {}]
  %s1 = inlined_call_operand.vmem [shape: f32[32,3072], index: 1, kind: input, shape index: {}]
  %s2 = inlined_call_operand.vmem [shape: bf16[3072,128], index: 2, kind: input, shape index: {}]
  %s3 = inlined_call_operand.vmem [shape: bf16[128,256], index: 3, kind: input, shape index: {}]
  %s4 = inlined_call_operand.hbm [shape: f32[32,256], index: 4, kind: output, shape index: {}]
  %s5 = sld [smem:[#allocation0]]
  $region45: #{base_classifier_forward.1} parent=0
    _
  %s7 = ssub.s32 1, %s5
  %s8 = scalar_select 0, %s7, %s5
  %9 = sst [smem:[#allocation3]] %s0
  $region1: #{base_classifier_forward.1} parent=0
    #allocation4 [shape = 'u8[32768]{0}', space=vmem, size = 0x8000, scoped, tag = 'output window, operand 0']
    #allocation5 [shape = 's32[2]{0}', space=sflag, size = 0x8, scoped, tag = 'scoped memory for base_classifier_forward.1']
    %10 = vsyncpa [#allocation5], 0
    %s11 = scalar_lea.sflag [#allocation5], 1
    %12 = vsyncpa %s11, 0
    loop: start=0, step=1, limit=4
    $region2: #{base_classifier_forward.1} parent=1 // loop_pre_header
      _
    $region3: #{base_classifier_forward.1} parent=1 // loop_header
      %s14 = sphi 0, %s18
      %p15 = scmp.ge.s32.totalorder %s14, 4
      %s24 = sphi 0, %s26
      %s27 = sphi 0, %s24
      %s28 = sphi 0, %s27
      %s44 = sphi 0, %s28
      %s48 = sphi 0, %s48
      %s50 = sphi 0, %s48
      %s51 = sphi 0, %s50
      %s65 = sphi 0, %s51
      %s69 = sphi 0, %s69
      %s71 = sphi 0, %s69
      %s72 = sphi 0, %s71
      %s86 = sphi 0, %s72
      %s92 = sphi 0, %s94
      %s95 = sphi 0, %s92
      %s96 = sphi 0, %s95
      %s112 = sphi 0, %s96
    $region4: #{base_classifier_forward.1} parent=1 // loop_header_branch
      %17 = sbr.rel (%p15) target = $region8
    $region5: #{base_classifier_forward.1} parent=1 // loop_body
      %s19 = ssub.s32 %s14, 1
      %s20 = ssub.s32 %s14, 2
      %s21 = sadd.s32 %s14, 1
      %s22 = ssub.s32 %s14, %s21
      %p23 = scmp.eq.s32.totalorder %s22, 0
      %s25 = sadd.s32 %s24, 1
      %s26 = scalar_select %p23, %s24, %s25
      %p29 = pneg %p23
      %p30 = scmp.eq.s32.totalorder %s14, 1
      %p31 = por %p29, %p30
      %p32 = scmp.ne.s32.totalorder %s24, %s27
      %p33 = scmp.eq.s32.totalorder %s14, 0
      %p34 = por %p32, %p33
      %p35 = scmp.ne.s32.totalorder %s24, %s27
      %p36 = scmp.eq.s32.totalorder %s19, 1
      %p37 = por %p35, %p36
      %p38 = scmp.ne.s32.totalorder %s27, %s28
      %p39 = scmp.eq.s32.totalorder %s19, 0
      %p40 = por %p38, %p39
      %p41 = scmp.ne.s32.totalorder %s27, %s28
      %p42 = scmp.eq.s32.totalorder %s20, 1
      %p43 = por %p41, %p42
      %p45 = scmp.ne.s32.totalorder %s28, %s44
      %p46 = scmp.eq.s32.totalorder %s20, 0
      %p47 = por %p45, %p46
      %s49 = sadd.s32 %s48, 1
      %p52 = scmp.eq.s32.totalorder %s14, 1
      %p53 = scmp.ne.s32.totalorder %s48, %s50
      %p54 = scmp.eq.s32.totalorder %s14, 0
      %p55 = por %p53, %p54
      %p56 = scmp.ne.s32.totalorder %s48, %s50
      %p57 = scmp.eq.s32.totalorder %s19, 1
      %p58 = por %p56, %p57
      %p59 = scmp.ne.s32.totalorder %s50, %s51
      %p60 = scmp.eq.s32.totalorder %s19, 0
      %p61 = por %p59, %p60
      %p62 = scmp.ne.s32.totalorder %s50, %s51
      %p63 = scmp.eq.s32.totalorder %s20, 1
      %p64 = por %p62, %p63
      %p66 = scmp.ne.s32.totalorder %s51, %s65
      %p67 = scmp.eq.s32.totalorder %s20, 0
      %p68 = por %p66, %p67
      %s70 = sadd.s32 %s69, 1
      %p73 = scmp.eq.s32.totalorder %s14, 1
      %p74 = scmp.ne.s32.totalorder %s69, %s71
      %p75 = scmp.eq.s32.totalorder %s14, 0
      %p76 = por %p74, %p75
      %p77 = scmp.ne.s32.totalorder %s69, %s71
      %p78 = scmp.eq.s32.totalorder %s19, 1
      %p79 = por %p77, %p78
      %p80 = scmp.ne.s32.totalorder %s71, %s72
      %p81 = scmp.eq.s32.totalorder %s19, 0
      %p82 = por %p80, %p81
      %p83 = scmp.ne.s32.totalorder %s71, %s72
      %p84 = scmp.eq.s32.totalorder %s20, 1
      %p85 = por %p83, %p84
      %p87 = scmp.ne.s32.totalorder %s72, %s86
      %p88 = scmp.eq.s32.totalorder %s20, 0
      %p89 = por %p87, %p88
      %s90 = ssub.s32 %s14, %s21
      %p91 = scmp.eq.s32.totalorder %s90, 0
      %s93 = sadd.s32 %s92, 1
      %s94 = scalar_select %p91, %s92, %s93
      %p97 = pneg %p91
      %p98 = scmp.eq.s32.totalorder %s14, 1
      %p99 = por %p97, %p98
      %p100 = scmp.ne.s32.totalorder %s92, %s95
      %p101 = scmp.eq.s32.totalorder %s14, 0
      %p102 = por %p100, %p101
      %p103 = scmp.ne.s32.totalorder %s92, %s95
      %p104 = scmp.eq.s32.totalorder %s19, 1
      %p105 = por %p103, %p104
      %p106 = scmp.ne.s32.totalorder %s95, %s96
      %p107 = scmp.eq.s32.totalorder %s19, 0
      %p108 = por %p106, %p107
      %p109 = scmp.ne.s32.totalorder %s95, %s96
      %p110 = scmp.eq.s32.totalorder %s20, 1
      %p111 = por %p109, %p110
      %p113 = scmp.ne.s32.totalorder %s96, %s112
      %p114 = scmp.eq.s32.totalorder %s20, 0
      %p115 = por %p113, %p114
      %p116 = scmp.le.s32.totalorder 1, %s14
      %p117 = scmp.lt.s32.totalorder %s14, 3
      %p118 = pnand %p116, %p117
      %p119 = pneg %p118
      // Predicated region
      $region9: #{base_classifier_forward.1} parent=5 // pred_check
        _
      $region10: #{base_classifier_forward.1} parent=5 // pred_check_branch
        %121 = sbr.rel (%p118) target = $region12
      $region11: #{base_classifier_forward.1} parent=5 // pred_region
        %s122 = ssub.s32 %s14, 1
        // Predicated region
        $region13: #{base_classifier_forward.1} parent=11 // pred_check
          %p123 = pneg %p61
        $region14: #{base_classifier_forward.1} parent=11 // pred_check_branch
          %125 = sbr.rel (%p123) target = $region16
        $region15: #{base_classifier_forward.1} parent=11 // pred_region
          _
        $region16: #{base_classifier_forward.1} parent=11 // pred_fallthru
          _
        // Predicated region
        $region17: #{base_classifier_forward.1} parent=11 // pred_check
          %p126 = pneg %p82
        $region18: #{base_classifier_forward.1} parent=11 // pred_check_branch
          %128 = sbr.rel (%p126) target = $region20
        $region19: #{base_classifier_forward.1} parent=11 // pred_region
          _
        $region20: #{base_classifier_forward.1} parent=11 // pred_fallthru
          _
      $region12: #{base_classifier_forward.1} parent=5 // pred_fallthru
        _
      %p129 = scmp.lt.s32.totalorder %s14, 2
      // Predicated region
      $region21: #{base_classifier_forward.1} parent=5 // pred_check
        %p130 = pneg %p129
      $region22: #{base_classifier_forward.1} parent=5 // pred_check_branch
        %132 = sbr.rel (%p130) target = $region24
      $region23: #{base_classifier_forward.1} parent=5 // pred_region
        // Predicated region
        $region25: #{base_classifier_forward.1} parent=23 // pred_check
          %p133 = pneg %p34
        $region26: #{base_classifier_forward.1} parent=23 // pred_check_branch
          %135 = sbr.rel (%p133) target = $region28
        $region27: #{base_classifier_forward.1} parent=23 // pred_region
          %s136 = smul.u32 2, %s14
          %p137 = scmp.lt.s32.totalorder %s136, 3
          %s138 = scalar_select %p137, %s136, 3
          %s139 = smul.addr %s138, 24
          %s140 = smul.addr %s139, 8
          %s141 = scalar_lea.vmem %s1, %s140
          %s142 = smul.u32 2, %s14
        $region28: #{base_classifier_forward.1} parent=23 // pred_fallthru
          _
      $region24: #{base_classifier_forward.1} parent=5 // pred_fallthru
        _
      %p143 = scmp.le.s32.totalorder 1, %s14
      %p144 = scmp.lt.s32.totalorder %s14, 3
      %p145 = pnand %p143, %p144
      %p146 = pneg %p145
      // Predicated region
      $region29: #{base_classifier_forward.1} parent=5 // pred_check
        _
      $region30: #{base_classifier_forward.1} parent=5 // pred_check_branch
        %148 = sbr.rel (%p145) target = $region32
      $region31: #{base_classifier_forward.1} parent=5 // pred_region
        %s149 = ssub.s32 %s14, 1
        %s150 = smul.u32 2, %s19
        %p151 = scmp.lt.s32.totalorder %s150, 3
        %s152 = scalar_select %p151, %s150, 3
        %s153 = smul.addr %s152, 24
        %s154 = smul.addr %s153, 8
        %s155 = scalar_lea.vmem %s1, %s154
        %p156 = pneg %p40
        %p157 = pneg %p37
        %p158 = pneg %p61
        %p159 = pneg %p58
        %p160 = pneg %p82
        %p161 = pneg %p79
        %p162 = pneg %p108
        %p163 = pneg %p105
        %s164 = sand.u32 %s95, 1
        %s165 = scalar_lea.sflag [#allocation5], %s164
        %s166 = sand.u32 %s95, 1
        %s167 = smul.addr %s166, 32
        %s168 = scalar_lea.vmem [#allocation4], %s167
        %s169 = smul.u32 2, %s19
        %p170 = scmp.lt.s32.totalorder %s169, 3
        %s171 = scalar_select %p170, %s169, 3
        %s172 = smul.addr %s171, 24
        %s173 = smul.addr %s172, 8
        %s174 = scalar_lea.vmem %s1, %s173
        %s175 = smul.u32 2, %s19
        %s176 = smul.u32 2, %s19
        %v177 = vld [vmem:[%s174] sm:$0xff]
        %v178 = vld [vmem:[%s174 + $0x8] sm:$0xff]
        %v179 = vld [vmem:[%s174 + $0x10] sm:$0xff]
        %v180 = vld [vmem:[%s174 + $0x18] sm:$0xff]
        %v181 = vld [vmem:[%s174 + $0x20] sm:$0xff]
        %v182 = vld [vmem:[%s174 + $0x28] sm:$0xff]
        %v183 = vld [vmem:[%s174 + $0x30] sm:$0xff]
        %v184 = vld [vmem:[%s174 + $0x38] sm:$0xff]
        %v185 = vld [vmem:[%s174 + $0x40] sm:$0xff]
        %v186 = vld [vmem:[%s174 + $0x48] sm:$0xff]
        %v187 = vld [vmem:[%s174 + $0x50] sm:$0xff]
        %v188 = vld [vmem:[%s174 + $0x58] sm:$0xff]
        %v189 = vld [vmem:[%s174 + $0x60] sm:$0xff]
        %v190 = vld [vmem:[%s174 + $0x68] sm:$0xff]
        %v191 = vld [vmem:[%s174 + $0x70] sm:$0xff]
        %v192 = vld [vmem:[%s174 + $0x78] sm:$0xff]
        %v193 = vld [vmem:[%s174 + $0x80] sm:$0xff]
        %v194 = vld [vmem:[%s174 + $0x88] sm:$0xff]
        %v195 = vld [vmem:[%s174 + $0x90] sm:$0xff]
        %v196 = vld [vmem:[%s174 + $0x98] sm:$0xff]
        %v197 = vld [vmem:[%s174 + $0xa0] sm:$0xff]
        %v198 = vld [vmem:[%s174 + $0xa8] sm:$0xff]
        %v199 = vld [vmem:[%s174 + $0xb0] sm:$0xff]
        %v200 = vld [vmem:[%s174 + $0xb8] sm:$0xff]
        %v201 = vld [vmem:[%s174 + $0xc0] sm:$0xff]
        %v202 = vld [vmem:[%s174 + $0xc8] sm:$0xff]
        %v203 = vld [vmem:[%s174 + $0xd0] sm:$0xff]
        %v204 = vld [vmem:[%s174 + $0xd8] sm:$0xff]
        %v205 = vld [vmem:[%s174 + $0xe0] sm:$0xff]
        %v206 = vld [vmem:[%s174 + $0xe8] sm:$0xff]
        %v207 = vld [vmem:[%s174 + $0xf0] sm:$0xff]
        %v208 = vld [vmem:[%s174 + $0xf8] sm:$0xff]
        %v209 = vld [vmem:[%s174 + $0x100] sm:$0xff]
        %v210 = vld [vmem:[%s174 + $0x108] sm:$0xff]
        %v211 = vld [vmem:[%s174 + $0x110] sm:$0xff]
        %v212 = vld [vmem:[%s174 + $0x118] sm:$0xff]
        %v213 = vld [vmem:[%s174 + $0x120] sm:$0xff]
        %v214 = vld [vmem:[%s174 + $0x128] sm:$0xff]
        %v215 = vld [vmem:[%s174 + $0x130] sm:$0xff]
        %v216 = vld [vmem:[%s174 + $0x138] sm:$0xff]
        %v217 = vld [vmem:[%s174 + $0x140] sm:$0xff]
        %v218 = vld [vmem:[%s174 + $0x148] sm:$0xff]
        %v219 = vld [vmem:[%s174 + $0x150] sm:$0xff]
        %v220 = vld [vmem:[%s174 + $0x158] sm:$0xff]
        %v221 = vld [vmem:[%s174 + $0x160] sm:$0xff]
        %v222 = vld [vmem:[%s174 + $0x168] sm:$0xff]
        %v223 = vld [vmem:[%s174 + $0x170] sm:$0xff]
        %v224 = vld [vmem:[%s174 + $0x178] sm:$0xff]
        %v225 = vpack.c.bf16 %v201, %v177
        %v226 = vpack.c.bf16 %v202, %v178
        %v227 = vpack.c.bf16 %v203, %v179
        %v228 = vpack.c.bf16 %v204, %v180
        %v229 = vpack.c.bf16 %v205, %v181
        %v230 = vpack.c.bf16 %v206, %v182
        %v231 = vpack.c.bf16 %v207, %v183
        %v232 = vpack.c.bf16 %v208, %v184
        %v233 = vpack.c.bf16 %v209, %v185
        %v234 = vpack.c.bf16 %v210, %v186
        %v235 = vpack.c.bf16 %v211, %v187
        %v236 = vpack.c.bf16 %v212, %v188
        %v237 = vpack.c.bf16 %v213, %v189
        %v238 = vpack.c.bf16 %v214, %v190
        %v239 = vpack.c.bf16 %v215, %v191
        %v240 = vpack.c.bf16 %v216, %v192
        %v241 = vpack.c.bf16 %v217, %v193
        %v242 = vpack.c.bf16 %v218, %v194
        %v243 = vpack.c.bf16 %v219, %v195
        %v244 = vpack.c.bf16 %v220, %v196
        %v245 = vpack.c.bf16 %v221, %v197
        %v246 = vpack.c.bf16 %v222, %v198
        %v247 = vpack.c.bf16 %v223, %v199
        %v248 = vpack.c.bf16 %v224, %v200
        %v249 = vld [vmem:[%s2] sm:$0xf]
        %v250 = vld [vmem:[%s2 + $0x4] sm:$0xf]
        %v251 = vld [vmem:[%s2 + $0x8] sm:$0xf]
        %v252 = vld [vmem:[%s2 + $0xc] sm:$0xf]
        %v253 = vld [vmem:[%s2 + $0x10] sm:$0xf]
        %v254 = vld [vmem:[%s2 + $0x14] sm:$0xf]
        %v255 = vld [vmem:[%s2 + $0x18] sm:$0xf]
        %v256 = vld [vmem:[%s2 + $0x1c] sm:$0xf]
        %v257 = vld [vmem:[%s2 + $0x20] sm:$0xf]
        %v258 = vld [vmem:[%s2 + $0x24] sm:$0xf]
        %v259 = vld [vmem:[%s2 + $0x28] sm:$0xf]
        %v260 = vld [vmem:[%s2 + $0x2c] sm:$0xf]
        %v261 = vld [vmem:[%s2 + $0x30] sm:$0xf]
        %v262 = vld [vmem:[%s2 + $0x34] sm:$0xf]
        %v263 = vld [vmem:[%s2 + $0x38] sm:$0xf]
        %v264 = vld [vmem:[%s2 + $0x3c] sm:$0xf]
        %v265 = vld [vmem:[%s2 + $0x40] sm:$0xf]
        %v266 = vld [vmem:[%s2 + $0x44] sm:$0xf]
        %v267 = vld [vmem:[%s2 + $0x48] sm:$0xf]
        %v268 = vld [vmem:[%s2 + $0x4c] sm:$0xf]
        %v269 = vld [vmem:[%s2 + $0x50] sm:$0xf]
        %v270 = vld [vmem:[%s2 + $0x54] sm:$0xf]
        %v271 = vld [vmem:[%s2 + $0x58] sm:$0xf]
        %v272 = vld [vmem:[%s2 + $0x5c] sm:$0xf]
        %v273 = vld [vmem:[%s2 + $0x60] sm:$0xf]
        %v274 = vld [vmem:[%s2 + $0x64] sm:$0xf]
        %v275 = vld [vmem:[%s2 + $0x68] sm:$0xf]
        %v276 = vld [vmem:[%s2 + $0x6c] sm:$0xf]
        %v277 = vld [vmem:[%s2 + $0x70] sm:$0xf]
        %v278 = vld [vmem:[%s2 + $0x74] sm:$0xf]
        %v279 = vld [vmem:[%s2 + $0x78] sm:$0xf]
        %v280 = vld [vmem:[%s2 + $0x7c] sm:$0xf]
        %v281 = vld [vmem:[%s2 + $0x80] sm:$0xf]
        %v282 = vld [vmem:[%s2 + $0x84] sm:$0xf]
        %v283 = vld [vmem:[%s2 + $0x88] sm:$0xf]
        %v284 = vld [vmem:[%s2 + $0x8c] sm:$0xf]
        %v285 = vld [vmem:[%s2 + $0x90] sm:$0xf]
        %v286 = vld [vmem:[%s2 + $0x94] sm:$0xf]
        %v287 = vld [vmem:[%s2 + $0x98] sm:$0xf]
        %v288 = vld [vmem:[%s2 + $0x9c] sm:$0xf]
        %v289 = vld [vmem:[%s2 + $0xa0] sm:$0xf]
        %v290 = vld [vmem:[%s2 + $0xa4] sm:$0xf]
        %v291 = vld [vmem:[%s2 + $0xa8] sm:$0xf]
        %v292 = vld [vmem:[%s2 + $0xac] sm:$0xf]
        %v293 = vld [vmem:[%s2 + $0xb0] sm:$0xf]
        %v294 = vld [vmem:[%s2 + $0xb4] sm:$0xf]
        %v295 = vld [vmem:[%s2 + $0xb8] sm:$0xf]
        %v296 = vld [vmem:[%s2 + $0xbc] sm:$0xf]
        %v297 = vld [vmem:[%s2 + $0xc0] sm:$0xf]
        %v298 = vld [vmem:[%s2 + $0xc4] sm:$0xf]
        %v299 = vld [vmem:[%s2 + $0xc8] sm:$0xf]
        %v300 = vld [vmem:[%s2 + $0xcc] sm:$0xf]
        %v301 = vld [vmem:[%s2 + $0xd0] sm:$0xf]
        %v302 = vld [vmem:[%s2 + $0xd4] sm:$0xf]
        %v303 = vld [vmem:[%s2 + $0xd8] sm:$0xf]
        %v304 = vld [vmem:[%s2 + $0xdc] sm:$0xf]
        %v305 = vld [vmem:[%s2 + $0xe0] sm:$0xf]
        %v306 = vld [vmem:[%s2 + $0xe4] sm:$0xf]
        %v307 = vld [vmem:[%s2 + $0xe8] sm:$0xf]
        %v308 = vld [vmem:[%s2 + $0xec] sm:$0xf]
        %v309 = vld [vmem:[%s2 + $0xf0] sm:$0xf]
        %v310 = vld [vmem:[%s2 + $0xf4] sm:$0xf]
        %v311 = vld [vmem:[%s2 + $0xf8] sm:$0xf]
        %v312 = vld [vmem:[%s2 + $0xfc] sm:$0xf]
        %v313 = vld [vmem:[%s2 + $0x100] sm:$0xf]
        %v314 = vld [vmem:[%s2 + $0x104] sm:$0xf]
        %v315 = vld [vmem:[%s2 + $0x108] sm:$0xf]
        %v316 = vld [vmem:[%s2 + $0x10c] sm:$0xf]
        %v317 = vld [vmem:[%s2 + $0x110] sm:$0xf]
        %v318 = vld [vmem:[%s2 + $0x114] sm:$0xf]
        %v319 = vld [vmem:[%s2 + $0x118] sm:$0xf]
        %v320 = vld [vmem:[%s2 + $0x11c] sm:$0xf]
        %v321 = vld [vmem:[%s2 + $0x120] sm:$0xf]
        %v322 = vld [vmem:[%s2 + $0x124] sm:$0xf]
        %v323 = vld [vmem:[%s2 + $0x128] sm:$0xf]
        %v324 = vld [vmem:[%s2 + $0x12c] sm:$0xf]
        %v325 = vld [vmem:[%s2 + $0x130] sm:$0xf]
        %v326 = vld [vmem:[%s2 + $0x134] sm:$0xf]
        %v327 = vld [vmem:[%s2 + $0x138] sm:$0xf]
        %v328 = vld [vmem:[%s2 + $0x13c] sm:$0xf]
        %v329 = vld [vmem:[%s2 + $0x140] sm:$0xf]
        %v330 = vld [vmem:[%s2 + $0x144] sm:$0xf]
        %v331 = vld [vmem:[%s2 + $0x148] sm:$0xf]
        %v332 = vld [vmem:[%s2 + $0x14c] sm:$0xf]
        %v333 = vld [vmem:[%s2 + $0x150] sm:$0xf]
        %v334 = vld [vmem:[%s2 + $0x154] sm:$0xf]
        %v335 = vld [vmem:[%s2 + $0x158] sm:$0xf]
        %v336 = vld [vmem:[%s2 + $0x15c] sm:$0xf]
        %v337 = vld [vmem:[%s2 + $0x160] sm:$0xf]
        %v338 = vld [vmem:[%s2 + $0x164] sm:$0xf]
        %v339 = vld [vmem:[%s2 + $0x168] sm:$0xf]
        %v340 = vld [vmem:[%s2 + $0x16c] sm:$0xf]
        %v341 = vld [vmem:[%s2 + $0x170] sm:$0xf]
        %v342 = vld [vmem:[%s2 + $0x174] sm:$0xf]
        %v343 = vld [vmem:[%s2 + $0x178] sm:$0xf]
        %v344 = vld [vmem:[%s2 + $0x17c] sm:$0xf]
        %v345 = vld [vmem:[%s2 + $0x180] sm:$0xf]
        %v346 = vld [vmem:[%s2 + $0x184] sm:$0xf]
        %v347 = vld [vmem:[%s2 + $0x188] sm:$0xf]
        %v348 = vld [vmem:[%s2 + $0x18c] sm:$0xf]
        %v349 = vld [vmem:[%s2 + $0x190] sm:$0xf]
        %v350 = vld [vmem:[%s2 + $0x194] sm:$0xf]
        %v351 = vld [vmem:[%s2 + $0x198] sm:$0xf]
        %v352 = vld [vmem:[%s2 + $0x19c] sm:$0xf]
        %v353 = vld [vmem:[%s2 + $0x1a0] sm:$0xf]
        %v354 = vld [vmem:[%s2 + $0x1a4] sm:$0xf]
        %v355 = vld [vmem:[%s2 + $0x1a8] sm:$0xf]
        %v356 = vld [vmem:[%s2 + $0x1ac] sm:$0xf]
        %v357 = vld [vmem:[%s2 + $0x1b0] sm:$0xf]
        %v358 = vld [vmem:[%s2 + $0x1b4] sm:$0xf]
        %v359 = vld [vmem:[%s2 + $0x1b8] sm:$0xf]
        %v360 = vld [vmem:[%s2 + $0x1bc] sm:$0xf]
        %v361 = vld [vmem:[%s2 + $0x1c0] sm:$0xf]
        %v362 = vld [vmem:[%s2 + $0x1c4] sm:$0xf]
        %v363 = vld [vmem:[%s2 + $0x1c8] sm:$0xf]
        %v364 = vld [vmem:[%s2 + $0x1cc] sm:$0xf]
        %v365 = vld [vmem:[%s2 + $0x1d0] sm:$0xf]
        %v366 = vld [vmem:[%s2 + $0x1d4] sm:$0xf]
        %v367 = vld [vmem:[%s2 + $0x1d8] sm:$0xf]
        %v368 = vld [vmem:[%s2 + $0x1dc] sm:$0xf]
        %v369 = vld [vmem:[%s2 + $0x1e0] sm:$0xf]
        %v370 = vld [vmem:[%s2 + $0x1e4] sm:$0xf]
        %v371 = vld [vmem:[%s2 + $0x1e8] sm:$0xf]
        %v372 = vld [vmem:[%s2 + $0x1ec] sm:$0xf]
        %v373 = vld [vmem:[%s2 + $0x1f0] sm:$0xf]
        %v374 = vld [vmem:[%s2 + $0x1f4] sm:$0xf]
        %v375 = vld [vmem:[%s2 + $0x1f8] sm:$0xf]
        %v376 = vld [vmem:[%s2 + $0x1fc] sm:$0xf]
        %v377 = vld [vmem:[%s2 + $0x200] sm:$0xf]
        %v378 = vld [vmem:[%s2 + $0x204] sm:$0xf]
        %v379 = vld [vmem:[%s2 + $0x208] sm:$0xf]
        %v380 = vld [vmem:[%s2 + $0x20c] sm:$0xf]
        %v381 = vld [vmem:[%s2 + $0x210] sm:$0xf]
        %v382 = vld [vmem:[%s2 + $0x214] sm:$0xf]
        %v383 = vld [vmem:[%s2 + $0x218] sm:$0xf]
        %v384 = vld [vmem:[%s2 + $0x21c] sm:$0xf]
        %v385 = vld [vmem:[%s2 + $0x220] sm:$0xf]
        %v386 = vld [vmem:[%s2 + $0x224] sm:$0xf]
        %v387 = vld [vmem:[%s2 + $0x228] sm:$0xf]
        %v388 = vld [vmem:[%s2 + $0x22c] sm:$0xf]
        %v389 = vld [vmem:[%s2 + $0x230] sm:$0xf]
        %v390 = vld [vmem:[%s2 + $0x234] sm:$0xf]
        %v391 = vld [vmem:[%s2 + $0x238] sm:$0xf]
        %v392 = vld [vmem:[%s2 + $0x23c] sm:$0xf]
        %v393 = vld [vmem:[%s2 + $0x240] sm:$0xf]
        %v394 = vld [vmem:[%s2 + $0x244] sm:$0xf]
        %v395 = vld [vmem:[%s2 + $0x248] sm:$0xf]
        %v396 = vld [vmem:[%s2 + $0x24c] sm:$0xf]
        %v397 = vld [vmem:[%s2 + $0x250] sm:$0xf]
        %v398 = vld [vmem:[%s2 + $0x254] sm:$0xf]
        %v399 = vld [vmem:[%s2 + $0x258] sm:$0xf]
        %v400 = vld [vmem:[%s2 + $0x25c] sm:$0xf]
        %v401 = vld [vmem:[%s2 + $0x260] sm:$0xf]
        %v402 = vld [vmem:[%s2 + $0x264] sm:$0xf]
        %v403 = vld [vmem:[%s2 + $0x268] sm:$0xf]
        %v404 = vld [vmem:[%s2 + $0x26c] sm:$0xf]
        %v405 = vld [vmem:[%s2 + $0x270] sm:$0xf]
        %v406 = vld [vmem:[%s2 + $0x274] sm:$0xf]
        %v407 = vld [vmem:[%s2 + $0x278] sm:$0xf]
        %v408 = vld [vmem:[%s2 + $0x27c] sm:$0xf]
        %v409 = vld [vmem:[%s2 + $0x280] sm:$0xf]
        %v410 = vld [vmem:[%s2 + $0x284] sm:$0xf]
        %v411 = vld [vmem:[%s2 + $0x288] sm:$0xf]
        %v412 = vld [vmem:[%s2 + $0x28c] sm:$0xf]
        %v413 = vld [vmem:[%s2 + $0x290] sm:$0xf]
        %v414 = vld [vmem:[%s2 + $0x294] sm:$0xf]
        %v415 = vld [vmem:[%s2 + $0x298] sm:$0xf]
        %v416 = vld [vmem:[%s2 + $0x29c] sm:$0xf]
        %v417 = vld [vmem:[%s2 + $0x2a0] sm:$0xf]
        %v418 = vld [vmem:[%s2 + $0x2a4] sm:$0xf]
        %v419 = vld [vmem:[%s2 + $0x2a8] sm:$0xf]
        %v420 = vld [vmem:[%s2 + $0x2ac] sm:$0xf]
        %v421 = vld [vmem:[%s2 + $0x2b0] sm:$0xf]
        %v422 = vld [vmem:[%s2 + $0x2b4] sm:$0xf]
        %v423 = vld [vmem:[%s2 + $0x2b8] sm:$0xf]
        %v424 = vld [vmem:[%s2 + $0x2bc] sm:$0xf]
        %v425 = vld [vmem:[%s2 + $0x2c0] sm:$0xf]
        %v426 = vld [vmem:[%s2 + $0x2c4] sm:$0xf]
        %v427 = vld [vmem:[%s2 + $0x2c8] sm:$0xf]
        %v428 = vld [vmem:[%s2 + $0x2cc] sm:$0xf]
        %v429 = vld [vmem:[%s2 + $0x2d0] sm:$0xf]
        %v430 = vld [vmem:[%s2 + $0x2d4] sm:$0xf]
        %v431 = vld [vmem:[%s2 + $0x2d8] sm:$0xf]
        %v432 = vld [vmem:[%s2 + $0x2dc] sm:$0xf]
        %v433 = vld [vmem:[%s2 + $0x2e0] sm:$0xf]
        %v434 = vld [vmem:[%s2 + $0x2e4] sm:$0xf]
        %v435 = vld [vmem:[%s2 + $0x2e8] sm:$0xf]
        %v436 = vld [vmem:[%s2 + $0x2ec] sm:$0xf]
        %v437 = vld [vmem:[%s2 + $0x2f0] sm:$0xf]
        %v438 = vld [vmem:[%s2 + $0x2f4] sm:$0xf]
        %v439 = vld [vmem:[%s2 + $0x2f8] sm:$0xf]
        %v440 = vld [vmem:[%s2 + $0x2fc] sm:$0xf]
        %v441 = vld [vmem:[%s2 + $0x300] sm:$0xf]
        %v442 = vld [vmem:[%s2 + $0x304] sm:$0xf]
        %v443 = vld [vmem:[%s2 + $0x308] sm:$0xf]
        %v444 = vld [vmem:[%s2 + $0x30c] sm:$0xf]
        %v445 = vld [vmem:[%s2 + $0x310] sm:$0xf]
        %v446 = vld [vmem:[%s2 + $0x314] sm:$0xf]
        %v447 = vld [vmem:[%s2 + $0x318] sm:$0xf]
        %v448 = vld [vmem:[%s2 + $0x31c] sm:$0xf]
        %v449 = vld [vmem:[%s2 + $0x320] sm:$0xf]
        %v450 = vld [vmem:[%s2 + $0x324] sm:$0xf]
        %v451 = vld [vmem:[%s2 + $0x328] sm:$0xf]
        %v452 = vld [vmem:[%s2 + $0x32c] sm:$0xf]
        %v453 = vld [vmem:[%s2 + $0x330] sm:$0xf]
        %v454 = vld [vmem:[%s2 + $0x334] sm:$0xf]
        %v455 = vld [vmem:[%s2 + $0x338] sm:$0xf]
        %v456 = vld [vmem:[%s2 + $0x33c] sm:$0xf]
        %v457 = vld [vmem:[%s2 + $0x340] sm:$0xf]
        %v458 = vld [vmem:[%s2 + $0x344] sm:$0xf]
        %v459 = vld [vmem:[%s2 + $0x348] sm:$0xf]
        %v460 = vld [vmem:[%s2 + $0x34c] sm:$0xf]
        %v461 = vld [vmem:[%s2 + $0x350] sm:$0xf]
        %v462 = vld [vmem:[%s2 + $0x354] sm:$0xf]
        %v463 = vld [vmem:[%s2 + $0x358] sm:$0xf]
        %v464 = vld [vmem:[%s2 + $0x35c] sm:$0xf]
        %v465 = vld [vmem:[%s2 + $0x360] sm:$0xf]
        %v466 = vld [vmem:[%s2 + $0x364] sm:$0xf]
        %v467 = vld [vmem:[%s2 + $0x368] sm:$0xf]
        %v468 = vld [vmem:[%s2 + $0x36c] sm:$0xf]
        %v469 = vld [vmem:[%s2 + $0x370] sm:$0xf]
        %v470 = vld [vmem:[%s2 + $0x374] sm:$0xf]
        %v471 = vld [vmem:[%s2 + $0x378] sm:$0xf]
        %v472 = vld [vmem:[%s2 + $0x37c] sm:$0xf]
        %v473 = vld [vmem:[%s2 + $0x380] sm:$0xf]
        %v474 = vld [vmem:[%s2 + $0x384] sm:$0xf]
        %v475 = vld [vmem:[%s2 + $0x388] sm:$0xf]
        %v476 = vld [vmem:[%s2 + $0x38c] sm:$0xf]
        %v477 = vld [vmem:[%s2 + $0x390] sm:$0xf]
        %v478 = vld [vmem:[%s2 + $0x394] sm:$0xf]
        %v479 = vld [vmem:[%s2 + $0x398] sm:$0xf]
        %v480 = vld [vmem:[%s2 + $0x39c] sm:$0xf]
        %v481 = vld [vmem:[%s2 + $0x3a0] sm:$0xf]
        %v482 = vld [vmem:[%s2 + $0x3a4] sm:$0xf]
        %v483 = vld [vmem:[%s2 + $0x3a8] sm:$0xf]
        %v484 = vld [vmem:[%s2 + $0x3ac] sm:$0xf]
        %v485 = vld [vmem:[%s2 + $0x3b0] sm:$0xf]
        %v486 = vld [vmem:[%s2 + $0x3b4] sm:$0xf]
        %v487 = vld [vmem:[%s2 + $0x3b8] sm:$0xf]
        %v488 = vld [vmem:[%s2 + $0x3bc] sm:$0xf]
        %v489 = vld [vmem:[%s2 + $0x3c0] sm:$0xf]
        %v490 = vld [vmem:[%s2 + $0x3c4] sm:$0xf]
        %v491 = vld [vmem:[%s2 + $0x3c8] sm:$0xf]
        %v492 = vld [vmem:[%s2 + $0x3cc] sm:$0xf]
        %v493 = vld [vmem:[%s2 + $0x3d0] sm:$0xf]
        %v494 = vld [vmem:[%s2 + $0x3d4] sm:$0xf]
        %v495 = vld [vmem:[%s2 + $0x3d8] sm:$0xf]
        %v496 = vld [vmem:[%s2 + $0x3dc] sm:$0xf]
        %v497 = vld [vmem:[%s2 + $0x3e0] sm:$0xf]
        %v498 = vld [vmem:[%s2 + $0x3e4] sm:$0xf]
        %v499 = vld [vmem:[%s2 + $0x3e8] sm:$0xf]
        %v500 = vld [vmem:[%s2 + $0x3ec] sm:$0xf]
        %v501 = vld [vmem:[%s2 + $0x3f0] sm:$0xf]
        %v502 = vld [vmem:[%s2 + $0x3f4] sm:$0xf]
        %v503 = vld [vmem:[%s2 + $0x3f8] sm:$0xf]
        %v504 = vld [vmem:[%s2 + $0x3fc] sm:$0xf]
        %v505 = vld [vmem:[%s2 + $0x400] sm:$0xf]
        %v506 = vld [vmem:[%s2 + $0x404] sm:$0xf]
        %v507 = vld [vmem:[%s2 + $0x408] sm:$0xf]
        %v508 = vld [vmem:[%s2 + $0x40c] sm:$0xf]
        %v509 = vld [vmem:[%s2 + $0x410] sm:$0xf]
        %v510 = vld [vmem:[%s2 + $0x414] sm:$0xf]
        %v511 = vld [vmem:[%s2 + $0x418] sm:$0xf]
        %v512 = vld [vmem:[%s2 + $0x41c] sm:$0xf]
        %v513 = vld [vmem:[%s2 + $0x420] sm:$0xf]
        %v514 = vld [vmem:[%s2 + $0x424] sm:$0xf]
        %v515 = vld [vmem:[%s2 + $0x428] sm:$0xf]
        %v516 = vld [vmem:[%s2 + $0x42c] sm:$0xf]
        %v517 = vld [vmem:[%s2 + $0x430] sm:$0xf]
        %v518 = vld [vmem:[%s2 + $0x434] sm:$0xf]
        %v519 = vld [vmem:[%s2 + $0x438] sm:$0xf]
        %v520 = vld [vmem:[%s2 + $0x43c] sm:$0xf]
        %v521 = vld [vmem:[%s2 + $0x440] sm:$0xf]
        %v522 = vld [vmem:[%s2 + $0x444] sm:$0xf]
        %v523 = vld [vmem:[%s2 + $0x448] sm:$0xf]
        %v524 = vld [vmem:[%s2 + $0x44c] sm:$0xf]
        %v525 = vld [vmem:[%s2 + $0x450] sm:$0xf]
        %v526 = vld [vmem:[%s2 + $0x454] sm:$0xf]
        %v527 = vld [vmem:[%s2 + $0x458] sm:$0xf]
        %v528 = vld [vmem:[%s2 + $0x45c] sm:$0xf]
        %v529 = vld [vmem:[%s2 + $0x460] sm:$0xf]
        %v530 = vld [vmem:[%s2 + $0x464] sm:$0xf]
        %v531 = vld [vmem:[%s2 + $0x468] sm:$0xf]
        %v532 = vld [vmem:[%s2 + $0x46c] sm:$0xf]
        %v533 = vld [vmem:[%s2 + $0x470] sm:$0xf]
        %v534 = vld [vmem:[%s2 + $0x474] sm:$0xf]
        %v535 = vld [vmem:[%s2 + $0x478] sm:$0xf]
        %v536 = vld [vmem:[%s2 + $0x47c] sm:$0xf]
        %v537 = vld [vmem:[%s2 + $0x480] sm:$0xf]
        %v538 = vld [vmem:[%s2 + $0x484] sm:$0xf]
        %v539 = vld [vmem:[%s2 + $0x488] sm:$0xf]
        %v540 = vld [vmem:[%s2 + $0x48c] sm:$0xf]
        %v541 = vld [vmem:[%s2 + $0x490] sm:$0xf]
        %v542 = vld [vmem:[%s2 + $0x494] sm:$0xf]
        %v543 = vld [vmem:[%s2 + $0x498] sm:$0xf]
        %v544 = vld [vmem:[%s2 + $0x49c] sm:$0xf]
        %v545 = vld [vmem:[%s2 + $0x4a0] sm:$0xf]
        %v546 = vld [vmem:[%s2 + $0x4a4] sm:$0xf]
        %v547 = vld [vmem:[%s2 + $0x4a8] sm:$0xf]
        %v548 = vld [vmem:[%s2 + $0x4ac] sm:$0xf]
        %v549 = vld [vmem:[%s2 + $0x4b0] sm:$0xf]
        %v550 = vld [vmem:[%s2 + $0x4b4] sm:$0xf]
        %v551 = vld [vmem:[%s2 + $0x4b8] sm:$0xf]
        %v552 = vld [vmem:[%s2 + $0x4bc] sm:$0xf]
        %v553 = vld [vmem:[%s2 + $0x4c0] sm:$0xf]
        %v554 = vld [vmem:[%s2 + $0x4c4] sm:$0xf]
        %v555 = vld [vmem:[%s2 + $0x4c8] sm:$0xf]
        %v556 = vld [vmem:[%s2 + $0x4cc] sm:$0xf]
        %v557 = vld [vmem:[%s2 + $0x4d0] sm:$0xf]
        %v558 = vld [vmem:[%s2 + $0x4d4] sm:$0xf]
        %v559 = vld [vmem:[%s2 + $0x4d8] sm:$0xf]
        %v560 = vld [vmem:[%s2 + $0x4dc] sm:$0xf]
        %v561 = vld [vmem:[%s2 + $0x4e0] sm:$0xf]
        %v562 = vld [vmem:[%s2 + $0x4e4] sm:$0xf]
        %v563 = vld [vmem:[%s2 + $0x4e8] sm:$0xf]
        %v564 = vld [vmem:[%s2 + $0x4ec] sm:$0xf]
        %v565 = vld [vmem:[%s2 + $0x4f0] sm:$0xf]
        %v566 = vld [vmem:[%s2 + $0x4f4] sm:$0xf]
        %v567 = vld [vmem:[%s2 + $0x4f8] sm:$0xf]
        %v568 = vld [vmem:[%s2 + $0x4fc] sm:$0xf]
        %v569 = vld [vmem:[%s2 + $0x500] sm:$0xf]
        %v570 = vld [vmem:[%s2 + $0x504] sm:$0xf]
        %v571 = vld [vmem:[%s2 + $0x508] sm:$0xf]
        %v572 = vld [vmem:[%s2 + $0x50c] sm:$0xf]
        %v573 = vld [vmem:[%s2 + $0x510] sm:$0xf]
        %v574 = vld [vmem:[%s2 + $0x514] sm:$0xf]
        %v575 = vld [vmem:[%s2 + $0x518] sm:$0xf]
        %v576 = vld [vmem:[%s2 + $0x51c] sm:$0xf]
        %v577 = vld [vmem:[%s2 + $0x520] sm:$0xf]
        %v578 = vld [vmem:[%s2 + $0x524] sm:$0xf]
        %v579 = vld [vmem:[%s2 + $0x528] sm:$0xf]
        %v580 = vld [vmem:[%s2 + $0x52c] sm:$0xf]
        %v581 = vld [vmem:[%s2 + $0x530] sm:$0xf]
        %v582 = vld [vmem:[%s2 + $0x534] sm:$0xf]
        %v583 = vld [vmem:[%s2 + $0x538] sm:$0xf]
        %v584 = vld [vmem:[%s2 + $0x53c] sm:$0xf]
        %v585 = vld [vmem:[%s2 + $0x540] sm:$0xf]
        %v586 = vld [vmem:[%s2 + $0x544] sm:$0xf]
        %v587 = vld [vmem:[%s2 + $0x548] sm:$0xf]
        %v588 = vld [vmem:[%s2 + $0x54c] sm:$0xf]
        %v589 = vld [vmem:[%s2 + $0x550] sm:$0xf]
        %v590 = vld [vmem:[%s2 + $0x554] sm:$0xf]
        %v591 = vld [vmem:[%s2 + $0x558] sm:$0xf]
        %v592 = vld [vmem:[%s2 + $0x55c] sm:$0xf]
        %v593 = vld [vmem:[%s2 + $0x560] sm:$0xf]
        %v594 = vld [vmem:[%s2 + $0x564] sm:$0xf]
        %v595 = vld [vmem:[%s2 + $0x568] sm:$0xf]
        %v596 = vld [vmem:[%s2 + $0x56c] sm:$0xf]
        %v597 = vld [vmem:[%s2 + $0x570] sm:$0xf]
        %v598 = vld [vmem:[%s2 + $0x574] sm:$0xf]
        %v599 = vld [vmem:[%s2 + $0x578] sm:$0xf]
        %v600 = vld [vmem:[%s2 + $0x57c] sm:$0xf]
        %v601 = vld [vmem:[%s2 + $0x580] sm:$0xf]
        %v602 = vld [vmem:[%s2 + $0x584] sm:$0xf]
        %v603 = vld [vmem:[%s2 + $0x588] sm:$0xf]
        %v604 = vld [vmem:[%s2 + $0x58c] sm:$0xf]
        %v605 = vld [vmem:[%s2 + $0x590] sm:$0xf]
        %v606 = vld [vmem:[%s2 + $0x594] sm:$0xf]
        %v607 = vld [vmem:[%s2 + $0x598] sm:$0xf]
        %v608 = vld [vmem:[%s2 + $0x59c] sm:$0xf]
        %v609 = vld [vmem:[%s2 + $0x5a0] sm:$0xf]
        %v610 = vld [vmem:[%s2 + $0x5a4] sm:$0xf]
        %v611 = vld [vmem:[%s2 + $0x5a8] sm:$0xf]
        %v612 = vld [vmem:[%s2 + $0x5ac] sm:$0xf]
        %v613 = vld [vmem:[%s2 + $0x5b0] sm:$0xf]
        %v614 = vld [vmem:[%s2 + $0x5b4] sm:$0xf]
        %v615 = vld [vmem:[%s2 + $0x5b8] sm:$0xf]
        %v616 = vld [vmem:[%s2 + $0x5bc] sm:$0xf]
        %v617 = vld [vmem:[%s2 + $0x5c0] sm:$0xf]
        %v618 = vld [vmem:[%s2 + $0x5c4] sm:$0xf]
        %v619 = vld [vmem:[%s2 + $0x5c8] sm:$0xf]
        %v620 = vld [vmem:[%s2 + $0x5cc] sm:$0xf]
        %v621 = vld [vmem:[%s2 + $0x5d0] sm:$0xf]
        %v622 = vld [vmem:[%s2 + $0x5d4] sm:$0xf]
        %v623 = vld [vmem:[%s2 + $0x5d8] sm:$0xf]
        %v624 = vld [vmem:[%s2 + $0x5dc] sm:$0xf]
        %v625 = vld [vmem:[%s2 + $0x5e0] sm:$0xf]
        %v626 = vld [vmem:[%s2 + $0x5e4] sm:$0xf]
        %v627 = vld [vmem:[%s2 + $0x5e8] sm:$0xf]
        %v628 = vld [vmem:[%s2 + $0x5ec] sm:$0xf]
        %v629 = vld [vmem:[%s2 + $0x5f0] sm:$0xf]
        %v630 = vld [vmem:[%s2 + $0x5f4] sm:$0xf]
        %v631 = vld [vmem:[%s2 + $0x5f8] sm:$0xf]
        %v632 = vld [vmem:[%s2 + $0x5fc] sm:$0xf]
        %v1017 = vunpack.c.l.b16 %v249
        %v1018 = vunpack.c.l.b16 %v250
        %v1019 = vunpack.c.l.b16 %v251
        %v1020 = vunpack.c.l.b16 %v252
        %v1021 = vunpack.c.l.b16 %v253
        %v1022 = vunpack.c.l.b16 %v254
        %v1023 = vunpack.c.l.b16 %v255
        %v1024 = vunpack.c.l.b16 %v256
        %v1025 = vunpack.c.l.b16 %v257
        %v1026 = vunpack.c.l.b16 %v258
        %v1027 = vunpack.c.l.b16 %v259
        %v1028 = vunpack.c.l.b16 %v260
        %v1029 = vunpack.c.l.b16 %v261
        %v1030 = vunpack.c.l.b16 %v262
        %v1031 = vunpack.c.l.b16 %v263
        %v1032 = vunpack.c.l.b16 %v264
        %v1033 = vunpack.c.l.b16 %v265
        %v1034 = vunpack.c.l.b16 %v266
        %v1035 = vunpack.c.l.b16 %v267
        %v1036 = vunpack.c.l.b16 %v268
        %v1037 = vunpack.c.l.b16 %v269
        %v1038 = vunpack.c.l.b16 %v270
        %v1039 = vunpack.c.l.b16 %v271
        %v1040 = vunpack.c.l.b16 %v272
        %v1041 = vunpack.c.l.b16 %v273
        %v1042 = vunpack.c.l.b16 %v274
        %v1043 = vunpack.c.l.b16 %v275
        %v1044 = vunpack.c.l.b16 %v276
        %v1045 = vunpack.c.l.b16 %v277
        %v1046 = vunpack.c.l.b16 %v278
        %v1047 = vunpack.c.l.b16 %v279
        %v1048 = vunpack.c.l.b16 %v280
        %v1049 = vunpack.c.l.b16 %v281
        %v1050 = vunpack.c.l.b16 %v282
        %v1051 = vunpack.c.l.b16 %v283
        %v1052 = vunpack.c.l.b16 %v284
        %v1053 = vunpack.c.l.b16 %v285
        %v1054 = vunpack.c.l.b16 %v286
        %v1055 = vunpack.c.l.b16 %v287
        %v1056 = vunpack.c.l.b16 %v288
        %v1057 = vunpack.c.l.b16 %v289
        %v1058 = vunpack.c.l.b16 %v290
        %v1059 = vunpack.c.l.b16 %v291
        %v1060 = vunpack.c.l.b16 %v292
        %v1061 = vunpack.c.l.b16 %v293
        %v1062 = vunpack.c.l.b16 %v294
        %v1063 = vunpack.c.l.b16 %v295
        %v1064 = vunpack.c.l.b16 %v296
        %v1065 = vunpack.c.l.b16 %v297
        %v1066 = vunpack.c.l.b16 %v298
        %v1067 = vunpack.c.l.b16 %v299
        %v1068 = vunpack.c.l.b16 %v300
        %v1069 = vunpack.c.l.b16 %v301
        %v1070 = vunpack.c.l.b16 %v302
        %v1071 = vunpack.c.l.b16 %v303
        %v1072 = vunpack.c.l.b16 %v304
        %v1073 = vunpack.c.l.b16 %v305
        %v1074 = vunpack.c.l.b16 %v306
        %v1075 = vunpack.c.l.b16 %v307
        %v1076 = vunpack.c.l.b16 %v308
        %v1077 = vunpack.c.l.b16 %v309
        %v1078 = vunpack.c.l.b16 %v310
        %v1079 = vunpack.c.l.b16 %v311
        %v1080 = vunpack.c.l.b16 %v312
        %v1081 = vunpack.c.l.b16 %v313
        %v1082 = vunpack.c.l.b16 %v314
        %v1083 = vunpack.c.l.b16 %v315
        %v1084 = vunpack.c.l.b16 %v316
        %v1085 = vunpack.c.l.b16 %v317
        %v1086 = vunpack.c.l.b16 %v318
        %v1087 = vunpack.c.l.b16 %v319
        %v1088 = vunpack.c.l.b16 %v320
        %v1089 = vunpack.c.l.b16 %v321
        %v1090 = vunpack.c.l.b16 %v322
        %v1091 = vunpack.c.l.b16 %v323
        %v1092 = vunpack.c.l.b16 %v324
        %v1093 = vunpack.c.l.b16 %v325
        %v1094 = vunpack.c.l.b16 %v326
        %v1095 = vunpack.c.l.b16 %v327
        %v1096 = vunpack.c.l.b16 %v328
        %v1097 = vunpack.c.l.b16 %v329
        %v1098 = vunpack.c.l.b16 %v330
        %v1099 = vunpack.c.l.b16 %v331
        %v1100 = vunpack.c.l.b16 %v332
        %v1101 = vunpack.c.l.b16 %v333
        %v1102 = vunpack.c.l.b16 %v334
        %v1103 = vunpack.c.l.b16 %v335
        %v1104 = vunpack.c.l.b16 %v336
        %v1105 = vunpack.c.l.b16 %v337
        %v1106 = vunpack.c.l.b16 %v338
        %v1107 = vunpack.c.l.b16 %v339
        %v1108 = vunpack.c.l.b16 %v340
        %v1109 = vunpack.c.l.b16 %v341
        %v1110 = vunpack.c.l.b16 %v342
        %v1111 = vunpack.c.l.b16 %v343
        %v1112 = vunpack.c.l.b16 %v344
        %v1113 = vunpack.c.l.b16 %v345
        %v1114 = vunpack.c.l.b16 %v346
        %v1115 = vunpack.c.l.b16 %v347
        %v1116 = vunpack.c.l.b16 %v348
        %v1117 = vunpack.c.l.b16 %v349
        %v1118 = vunpack.c.l.b16 %v350
        %v1119 = vunpack.c.l.b16 %v351
        %v1120 = vunpack.c.l.b16 %v352
        %v1121 = vunpack.c.l.b16 %v353
        %v1122 = vunpack.c.l.b16 %v354
        %v1123 = vunpack.c.l.b16 %v355
        %v1124 = vunpack.c.l.b16 %v356
        %v1125 = vunpack.c.l.b16 %v357
        %v1126 = vunpack.c.l.b16 %v358
        %v1127 = vunpack.c.l.b16 %v359
        %v1128 = vunpack.c.l.b16 %v360
        %v1129 = vunpack.c.l.b16 %v361
        %v1130 = vunpack.c.l.b16 %v362
        %v1131 = vunpack.c.l.b16 %v363
        %v1132 = vunpack.c.l.b16 %v364
        %v1133 = vunpack.c.l.b16 %v365
        %v1134 = vunpack.c.l.b16 %v366
        %v1135 = vunpack.c.l.b16 %v367
        %v1136 = vunpack.c.l.b16 %v368
        %v1137 = vunpack.c.l.b16 %v369
        %v1138 = vunpack.c.l.b16 %v370
        %v1139 = vunpack.c.l.b16 %v371
        %v1140 = vunpack.c.l.b16 %v372
        %v1141 = vunpack.c.l.b16 %v373
        %v1142 = vunpack.c.l.b16 %v374
        %v1143 = vunpack.c.l.b16 %v375
        %v1144 = vunpack.c.l.b16 %v376
        %v1145 = vunpack.c.l.b16 %v377
        %v1146 = vunpack.c.l.b16 %v378
        %v1147 = vunpack.c.l.b16 %v379
        %v1148 = vunpack.c.l.b16 %v380
        %v1149 = vunpack.c.l.b16 %v381
        %v1150 = vunpack.c.l.b16 %v382
        %v1151 = vunpack.c.l.b16 %v383
        %v1152 = vunpack.c.l.b16 %v384
        %v1153 = vunpack.c.l.b16 %v385
        %v1154 = vunpack.c.l.b16 %v386
        %v1155 = vunpack.c.l.b16 %v387
        %v1156 = vunpack.c.l.b16 %v388
        %v1157 = vunpack.c.l.b16 %v389
        %v1158 = vunpack.c.l.b16 %v390
        %v1159 = vunpack.c.l.b16 %v391
        %v1160 = vunpack.c.l.b16 %v392
        %v1161 = vunpack.c.l.b16 %v393
        %v1162 = vunpack.c.l.b16 %v394
        %v1163 = vunpack.c.l.b16 %v395
        %v1164 = vunpack.c.l.b16 %v396
        %v1165 = vunpack.c.l.b16 %v397
        %v1166 = vunpack.c.l.b16 %v398
        %v1167 = vunpack.c.l.b16 %v399
        %v1168 = vunpack.c.l.b16 %v400
        %v1169 = vunpack.c.l.b16 %v401
        %v1170 = vunpack.c.l.b16 %v402
        %v1171 = vunpack.c.l.b16 %v403
        %v1172 = vunpack.c.l.b16 %v404
        %v1173 = vunpack.c.l.b16 %v405
        %v1174 = vunpack.c.l.b16 %v406
        %v1175 = vunpack.c.l.b16 %v407
        %v1176 = vunpack.c.l.b16 %v408
        %v1177 = vunpack.c.l.b16 %v409
        %v1178 = vunpack.c.l.b16 %v410
        %v1179 = vunpack.c.l.b16 %v411
        %v1180 = vunpack.c.l.b16 %v412
        %v1181 = vunpack.c.l.b16 %v413
        %v1182 = vunpack.c.l.b16 %v414
        %v1183 = vunpack.c.l.b16 %v415
        %v1184 = vunpack.c.l.b16 %v416
        %v1185 = vunpack.c.l.b16 %v417
        %v1186 = vunpack.c.l.b16 %v418
        %v1187 = vunpack.c.l.b16 %v419
        %v1188 = vunpack.c.l.b16 %v420
        %v1189 = vunpack.c.l.b16 %v421
        %v1190 = vunpack.c.l.b16 %v422
        %v1191 = vunpack.c.l.b16 %v423
        %v1192 = vunpack.c.l.b16 %v424
        %v1193 = vunpack.c.l.b16 %v425
        %v1194 = vunpack.c.l.b16 %v426
        %v1195 = vunpack.c.l.b16 %v427
        %v1196 = vunpack.c.l.b16 %v428
        %v1197 = vunpack.c.l.b16 %v429
        %v1198 = vunpack.c.l.b16 %v430
        %v1199 = vunpack.c.l.b16 %v431
        %v1200 = vunpack.c.l.b16 %v432
        %v1201 = vunpack.c.l.b16 %v433
        %v1202 = vunpack.c.l.b16 %v434
        %v1203 = vunpack.c.l.b16 %v435
        %v1204 = vunpack.c.l.b16 %v436
        %v1205 = vunpack.c.l.b16 %v437
        %v1206 = vunpack.c.l.b16 %v438
        %v1207 = vunpack.c.l.b16 %v439
        %v1208 = vunpack.c.l.b16 %v440
        %v1209 = vunpack.c.l.b16 %v441
        %v1210 = vunpack.c.l.b16 %v442
        %v1211 = vunpack.c.l.b16 %v443
        %v1212 = vunpack.c.l.b16 %v444
        %v1213 = vunpack.c.l.b16 %v445
        %v1214 = vunpack.c.l.b16 %v446
        %v1215 = vunpack.c.l.b16 %v447
        %v1216 = vunpack.c.l.b16 %v448
        %v1217 = vunpack.c.l.b16 %v449
        %v1218 = vunpack.c.l.b16 %v450
        %v1219 = vunpack.c.l.b16 %v451
        %v1220 = vunpack.c.l.b16 %v452
        %v1221 = vunpack.c.l.b16 %v453
        %v1222 = vunpack.c.l.b16 %v454
        %v1223 = vunpack.c.l.b16 %v455
        %v1224 = vunpack.c.l.b16 %v456
        %v1225 = vunpack.c.l.b16 %v457
        %v1226 = vunpack.c.l.b16 %v458
        %v1227 = vunpack.c.l.b16 %v459
        %v1228 = vunpack.c.l.b16 %v460
        %v1229 = vunpack.c.l.b16 %v461
        %v1230 = vunpack.c.l.b16 %v462
        %v1231 = vunpack.c.l.b16 %v463
        %v1232 = vunpack.c.l.b16 %v464
        %v1233 = vunpack.c.l.b16 %v465
        %v1234 = vunpack.c.l.b16 %v466
        %v1235 = vunpack.c.l.b16 %v467
        %v1236 = vunpack.c.l.b16 %v468
        %v1237 = vunpack.c.l.b16 %v469
        %v1238 = vunpack.c.l.b16 %v470
        %v1239 = vunpack.c.l.b16 %v471
        %v1240 = vunpack.c.l.b16 %v472
        %v1241 = vunpack.c.l.b16 %v473
        %v1242 = vunpack.c.l.b16 %v474
        %v1243 = vunpack.c.l.b16 %v475
        %v1244 = vunpack.c.l.b16 %v476
        %v1245 = vunpack.c.l.b16 %v477
        %v1246 = vunpack.c.l.b16 %v478
        %v1247 = vunpack.c.l.b16 %v479
        %v1248 = vunpack.c.l.b16 %v480
        %v1249 = vunpack.c.l.b16 %v481
        %v1250 = vunpack.c.l.b16 %v482
        %v1251 = vunpack.c.l.b16 %v483
        %v1252 = vunpack.c.l.b16 %v484
        %v1253 = vunpack.c.l.b16 %v485
        %v1254 = vunpack.c.l.b16 %v486
        %v1255 = vunpack.c.l.b16 %v487
        %v1256 = vunpack.c.l.b16 %v488
        %v1257 = vunpack.c.l.b16 %v489
        %v1258 = vunpack.c.l.b16 %v490
        %v1259 = vunpack.c.l.b16 %v491
        %v1260 = vunpack.c.l.b16 %v492
        %v1261 = vunpack.c.l.b16 %v493
        %v1262 = vunpack.c.l.b16 %v494
        %v1263 = vunpack.c.l.b16 %v495
        %v1264 = vunpack.c.l.b16 %v496
        %v1265 = vunpack.c.l.b16 %v497
        %v1266 = vunpack.c.l.b16 %v498
        %v1267 = vunpack.c.l.b16 %v499
        %v1268 = vunpack.c.l.b16 %v500
        %v1269 = vunpack.c.l.b16 %v501
        %v1270 = vunpack.c.l.b16 %v502
        %v1271 = vunpack.c.l.b16 %v503
        %v1272 = vunpack.c.l.b16 %v504
        %v1273 = vunpack.c.l.b16 %v505
        %v1274 = vunpack.c.l.b16 %v506
        %v1275 = vunpack.c.l.b16 %v507
        %v1276 = vunpack.c.l.b16 %v508
        %v1277 = vunpack.c.l.b16 %v509
        %v1278 = vunpack.c.l.b16 %v510
        %v1279 = vunpack.c.l.b16 %v511
        %v1280 = vunpack.c.l.b16 %v512
        %v1281 = vunpack.c.l.b16 %v513
        %v1282 = vunpack.c.l.b16 %v514
        %v1283 = vunpack.c.l.b16 %v515
        %v1284 = vunpack.c.l.b16 %v516
        %v1285 = vunpack.c.l.b16 %v517
        %v1286 = vunpack.c.l.b16 %v518
        %v1287 = vunpack.c.l.b16 %v519
        %v1288 = vunpack.c.l.b16 %v520
        %v1289 = vunpack.c.l.b16 %v521
        %v1290 = vunpack.c.l.b16 %v522
        %v1291 = vunpack.c.l.b16 %v523
        %v1292 = vunpack.c.l.b16 %v524
        %v1293 = vunpack.c.l.b16 %v525
        %v1294 = vunpack.c.l.b16 %v526
        %v1295 = vunpack.c.l.b16 %v527
        %v1296 = vunpack.c.l.b16 %v528
        %v1297 = vunpack.c.l.b16 %v529
        %v1298 = vunpack.c.l.b16 %v530
        %v1299 = vunpack.c.l.b16 %v531
        %v1300 = vunpack.c.l.b16 %v532
        %v1301 = vunpack.c.l.b16 %v533
        %v1302 = vunpack.c.l.b16 %v534
        %v1303 = vunpack.c.l.b16 %v535
        %v1304 = vunpack.c.l.b16 %v536
        %v1305 = vunpack.c.l.b16 %v537
        %v1306 = vunpack.c.l.b16 %v538
        %v1307 = vunpack.c.l.b16 %v539
        %v1308 = vunpack.c.l.b16 %v540
        %v1309 = vunpack.c.l.b16 %v541
        %v1310 = vunpack.c.l.b16 %v542
        %v1311 = vunpack.c.l.b16 %v543
        %v1312 = vunpack.c.l.b16 %v544
        %v1313 = vunpack.c.l.b16 %v545
        %v1314 = vunpack.c.l.b16 %v546
        %v1315 = vunpack.c.l.b16 %v547
        %v1316 = vunpack.c.l.b16 %v548
        %v1317 = vunpack.c.l.b16 %v549
        %v1318 = vunpack.c.l.b16 %v550
        %v1319 = vunpack.c.l.b16 %v551
        %v1320 = vunpack.c.l.b16 %v552
        %v1321 = vunpack.c.l.b16 %v553
        %v1322 = vunpack.c.l.b16 %v554
        %v1323 = vunpack.c.l.b16 %v555
        %v1324 = vunpack.c.l.b16 %v556
        %v1325 = vunpack.c.l.b16 %v557
        %v1326 = vunpack.c.l.b16 %v558
        %v1327 = vunpack.c.l.b16 %v559
        %v1328 = vunpack.c.l.b16 %v560
        %v1329 = vunpack.c.l.b16 %v561
        %v1330 = vunpack.c.l.b16 %v562
        %v1331 = vunpack.c.l.b16 %v563
        %v1332 = vunpack.c.l.b16 %v564
        %v1333 = vunpack.c.l.b16 %v565
        %v1334 = vunpack.c.l.b16 %v566
        %v1335 = vunpack.c.l.b16 %v567
        %v1336 = vunpack.c.l.b16 %v568
        %v1337 = vunpack.c.l.b16 %v569
        %v1338 = vunpack.c.l.b16 %v570
        %v1339 = vunpack.c.l.b16 %v571
        %v1340 = vunpack.c.l.b16 %v572
        %v1341 = vunpack.c.l.b16 %v573
        %v1342 = vunpack.c.l.b16 %v574
        %v1343 = vunpack.c.l.b16 %v575
        %v1344 = vunpack.c.l.b16 %v576
        %v1345 = vunpack.c.l.b16 %v577
        %v1346 = vunpack.c.l.b16 %v578
        %v1347 = vunpack.c.l.b16 %v579
        %v1348 = vunpack.c.l.b16 %v580
        %v1349 = vunpack.c.l.b16 %v581
        %v1350 = vunpack.c.l.b16 %v582
        %v1351 = vunpack.c.l.b16 %v583
        %v1352 = vunpack.c.l.b16 %v584
        %v1353 = vunpack.c.l.b16 %v585
        %v1354 = vunpack.c.l.b16 %v586
        %v1355 = vunpack.c.l.b16 %v587
        %v1356 = vunpack.c.l.b16 %v588
        %v1357 = vunpack.c.l.b16 %v589
        %v1358 = vunpack.c.l.b16 %v590
        %v1359 = vunpack.c.l.b16 %v591
        %v1360 = vunpack.c.l.b16 %v592
        %v1361 = vunpack.c.l.b16 %v593
        %v1362 = vunpack.c.l.b16 %v594
        %v1363 = vunpack.c.l.b16 %v595
        %v1364 = vunpack.c.l.b16 %v596
        %v1365 = vunpack.c.l.b16 %v597
        %v1366 = vunpack.c.l.b16 %v598
        %v1367 = vunpack.c.l.b16 %v599
        %v1368 = vunpack.c.l.b16 %v600
        %v1369 = vunpack.c.l.b16 %v601
        %v1370 = vunpack.c.l.b16 %v602
        %v1371 = vunpack.c.l.b16 %v603
        %v1372 = vunpack.c.l.b16 %v604
        %v1373 = vunpack.c.l.b16 %v605
        %v1374 = vunpack.c.l.b16 %v606
        %v1375 = vunpack.c.l.b16 %v607
        %v1376 = vunpack.c.l.b16 %v608
        %v1377 = vunpack.c.l.b16 %v609
        %v1378 = vunpack.c.l.b16 %v610
        %v1379 = vunpack.c.l.b16 %v611
        %v1380 = vunpack.c.l.b16 %v612
        %v1381 = vunpack.c.l.b16 %v613
        %v1382 = vunpack.c.l.b16 %v614
        %v1383 = vunpack.c.l.b16 %v615
        %v1384 = vunpack.c.l.b16 %v616
        %v1385 = vunpack.c.l.b16 %v617
        %v1386 = vunpack.c.l.b16 %v618
        %v1387 = vunpack.c.l.b16 %v619
        %v1388 = vunpack.c.l.b16 %v620
        %v1389 = vunpack.c.l.b16 %v621
        %v1390 = vunpack.c.l.b16 %v622
        %v1391 = vunpack.c.l.b16 %v623
        %v1392 = vunpack.c.l.b16 %v624
        %v1393 = vunpack.c.l.b16 %v625
        %v1394 = vunpack.c.l.b16 %v626
        %v1395 = vunpack.c.l.b16 %v627
        %v1396 = vunpack.c.l.b16 %v628
        %v1397 = vunpack.c.l.b16 %v629
        %v1398 = vunpack.c.l.b16 %v630
        %v1399 = vunpack.c.l.b16 %v631
        %v1400 = vunpack.c.l.b16 %v632
        %v1401 = vpack.c.b16 %v1018, %v1017
        %v1402 = vpack.c.b16 %v1020, %v1019
        %v1403 = vpack.c.b16 %v1022, %v1021
        %v1404 = vpack.c.b16 %v1024, %v1023
        %v1405 = vpack.c.b16 %v1026, %v1025
        %v1406 = vpack.c.b16 %v1028, %v1027
        %v1407 = vpack.c.b16 %v1030, %v1029
        %v1408 = vpack.c.b16 %v1032, %v1031
        %v1409 = vpack.c.b16 %v1034, %v1033
        %v1410 = vpack.c.b16 %v1036, %v1035
        %v1411 = vpack.c.b16 %v1038, %v1037
        %v1412 = vpack.c.b16 %v1040, %v1039
        %v1413 = vpack.c.b16 %v1042, %v1041
        %v1414 = vpack.c.b16 %v1044, %v1043
        %v1415 = vpack.c.b16 %v1046, %v1045
        %v1416 = vpack.c.b16 %v1048, %v1047
        %v1417 = vpack.c.b16 %v1050, %v1049
        %v1418 = vpack.c.b16 %v1052, %v1051
        %v1419 = vpack.c.b16 %v1054, %v1053
        %v1420 = vpack.c.b16 %v1056, %v1055
        %v1421 = vpack.c.b16 %v1058, %v1057
        %v1422 = vpack.c.b16 %v1060, %v1059
        %v1423 = vpack.c.b16 %v1062, %v1061
        %v1424 = vpack.c.b16 %v1064, %v1063
        %v1425 = vpack.c.b16 %v1066, %v1065
        %v1426 = vpack.c.b16 %v1068, %v1067
        %v1427 = vpack.c.b16 %v1070, %v1069
        %v1428 = vpack.c.b16 %v1072, %v1071
        %v1429 = vpack.c.b16 %v1074, %v1073
        %v1430 = vpack.c.b16 %v1076, %v1075
        %v1431 = vpack.c.b16 %v1078, %v1077
        %v1432 = vpack.c.b16 %v1080, %v1079
        %v1433 = vpack.c.b16 %v1082, %v1081
        %v1434 = vpack.c.b16 %v1084, %v1083
        %v1435 = vpack.c.b16 %v1086, %v1085
        %v1436 = vpack.c.b16 %v1088, %v1087
        %v1437 = vpack.c.b16 %v1090, %v1089
        %v1438 = vpack.c.b16 %v1092, %v1091
        %v1439 = vpack.c.b16 %v1094, %v1093
        %v1440 = vpack.c.b16 %v1096, %v1095
        %v1441 = vpack.c.b16 %v1098, %v1097
        %v1442 = vpack.c.b16 %v1100, %v1099
        %v1443 = vpack.c.b16 %v1102, %v1101
        %v1444 = vpack.c.b16 %v1104, %v1103
        %v1445 = vpack.c.b16 %v1106, %v1105
        %v1446 = vpack.c.b16 %v1108, %v1107
        %v1447 = vpack.c.b16 %v1110, %v1109
        %v1448 = vpack.c.b16 %v1112, %v1111
        %v1449 = vpack.c.b16 %v1114, %v1113
        %v1450 = vpack.c.b16 %v1116, %v1115
        %v1451 = vpack.c.b16 %v1118, %v1117
        %v1452 = vpack.c.b16 %v1120, %v1119
        %v1453 = vpack.c.b16 %v1122, %v1121
        %v1454 = vpack.c.b16 %v1124, %v1123
        %v1455 = vpack.c.b16 %v1126, %v1125
        %v1456 = vpack.c.b16 %v1128, %v1127
        %v1457 = vpack.c.b16 %v1130, %v1129
        %v1458 = vpack.c.b16 %v1132, %v1131
        %v1459 = vpack.c.b16 %v1134, %v1133
        %v1460 = vpack.c.b16 %v1136, %v1135
        %v1461 = vpack.c.b16 %v1138, %v1137
        %v1462 = vpack.c.b16 %v1140, %v1139
        %v1463 = vpack.c.b16 %v1142, %v1141
        %v1464 = vpack.c.b16 %v1144, %v1143
        %v1465 = vpack.c.b16 %v1146, %v1145
        %v1466 = vpack.c.b16 %v1148, %v1147
        %v1467 = vpack.c.b16 %v1150, %v1149
        %v1468 = vpack.c.b16 %v1152, %v1151
        %v1469 = vpack.c.b16 %v1154, %v1153
        %v1470 = vpack.c.b16 %v1156, %v1155
        %v1471 = vpack.c.b16 %v1158, %v1157
        %v1472 = vpack.c.b16 %v1160, %v1159
        %v1473 = vpack.c.b16 %v1162, %v1161
        %v1474 = vpack.c.b16 %v1164, %v1163
        %v1475 = vpack.c.b16 %v1166, %v1165
        %v1476 = vpack.c.b16 %v1168, %v1167
        %v1477 = vpack.c.b16 %v1170, %v1169
        %v1478 = vpack.c.b16 %v1172, %v1171
        %v1479 = vpack.c.b16 %v1174, %v1173
        %v1480 = vpack.c.b16 %v1176, %v1175
        %v1481 = vpack.c.b16 %v1178, %v1177
        %v1482 = vpack.c.b16 %v1180, %v1179
        %v1483 = vpack.c.b16 %v1182, %v1181
        %v1484 = vpack.c.b16 %v1184, %v1183
        %v1485 = vpack.c.b16 %v1186, %v1185
        %v1486 = vpack.c.b16 %v1188, %v1187
        %v1487 = vpack.c.b16 %v1190, %v1189
        %v1488 = vpack.c.b16 %v1192, %v1191
        %v1489 = vpack.c.b16 %v1194, %v1193
        %v1490 = vpack.c.b16 %v1196, %v1195
        %v1491 = vpack.c.b16 %v1198, %v1197
        %v1492 = vpack.c.b16 %v1200, %v1199
        %v1493 = vpack.c.b16 %v1202, %v1201
        %v1494 = vpack.c.b16 %v1204, %v1203
        %v1495 = vpack.c.b16 %v1206, %v1205
        %v1496 = vpack.c.b16 %v1208, %v1207
        %v1497 = vpack.c.b16 %v1210, %v1209
        %v1498 = vpack.c.b16 %v1212, %v1211
        %v1499 = vpack.c.b16 %v1214, %v1213
        %v1500 = vpack.c.b16 %v1216, %v1215
        %v1501 = vpack.c.b16 %v1218, %v1217
        %v1502 = vpack.c.b16 %v1220, %v1219
        %v1503 = vpack.c.b16 %v1222, %v1221
        %v1504 = vpack.c.b16 %v1224, %v1223
        %v1505 = vpack.c.b16 %v1226, %v1225
        %v1506 = vpack.c.b16 %v1228, %v1227
        %v1507 = vpack.c.b16 %v1230, %v1229
        %v1508 = vpack.c.b16 %v1232, %v1231
        %v1509 = vpack.c.b16 %v1234, %v1233
        %v1510 = vpack.c.b16 %v1236, %v1235
        %v1511 = vpack.c.b16 %v1238, %v1237
        %v1512 = vpack.c.b16 %v1240, %v1239
        %v1513 = vpack.c.b16 %v1242, %v1241
        %v1514 = vpack.c.b16 %v1244, %v1243
        %v1515 = vpack.c.b16 %v1246, %v1245
        %v1516 = vpack.c.b16 %v1248, %v1247
        %v1517 = vpack.c.b16 %v1250, %v1249
        %v1518 = vpack.c.b16 %v1252, %v1251
        %v1519 = vpack.c.b16 %v1254, %v1253
        %v1520 = vpack.c.b16 %v1256, %v1255
        %v1521 = vpack.c.b16 %v1258, %v1257
        %v1522 = vpack.c.b16 %v1260, %v1259
        %v1523 = vpack.c.b16 %v1262, %v1261
        %v1524 = vpack.c.b16 %v1264, %v1263
        %v1525 = vpack.c.b16 %v1266, %v1265
        %v1526 = vpack.c.b16 %v1268, %v1267
        %v1527 = vpack.c.b16 %v1270, %v1269
        %v1528 = vpack.c.b16 %v1272, %v1271
        %v1529 = vpack.c.b16 %v1274, %v1273
        %v1530 = vpack.c.b16 %v1276, %v1275
        %v1531 = vpack.c.b16 %v1278, %v1277
        %v1532 = vpack.c.b16 %v1280, %v1279
        %v1533 = vpack.c.b16 %v1282, %v1281
        %v1534 = vpack.c.b16 %v1284, %v1283
        %v1535 = vpack.c.b16 %v1286, %v1285
        %v1536 = vpack.c.b16 %v1288, %v1287
        %v1537 = vpack.c.b16 %v1290, %v1289
        %v1538 = vpack.c.b16 %v1292, %v1291
        %v1539 = vpack.c.b16 %v1294, %v1293
        %v1540 = vpack.c.b16 %v1296, %v1295
        %v1541 = vpack.c.b16 %v1298, %v1297
        %v1542 = vpack.c.b16 %v1300, %v1299
        %v1543 = vpack.c.b16 %v1302, %v1301
        %v1544 = vpack.c.b16 %v1304, %v1303
        %v1545 = vpack.c.b16 %v1306, %v1305
        %v1546 = vpack.c.b16 %v1308, %v1307
        %v1547 = vpack.c.b16 %v1310, %v1309
        %v1548 = vpack.c.b16 %v1312, %v1311
        %v1549 = vpack.c.b16 %v1314, %v1313
        %v1550 = vpack.c.b16 %v1316, %v1315
        %v1551 = vpack.c.b16 %v1318, %v1317
        %v1552 = vpack.c.b16 %v1320, %v1319
        %v1553 = vpack.c.b16 %v1322, %v1321
        %v1554 = vpack.c.b16 %v1324, %v1323
        %v1555 = vpack.c.b16 %v1326, %v1325
        %v1556 = vpack.c.b16 %v1328, %v1327
        %v1557 = vpack.c.b16 %v1330, %v1329
        %v1558 = vpack.c.b16 %v1332, %v1331
        %v1559 = vpack.c.b16 %v1334, %v1333
        %v1560 = vpack.c.b16 %v1336, %v1335
        %v1561 = vpack.c.b16 %v1338, %v1337
        %v1562 = vpack.c.b16 %v1340, %v1339
        %v1563 = vpack.c.b16 %v1342, %v1341
        %v1564 = vpack.c.b16 %v1344, %v1343
        %v1565 = vpack.c.b16 %v1346, %v1345
        %v1566 = vpack.c.b16 %v1348, %v1347
        %v1567 = vpack.c.b16 %v1350, %v1349
        %v1568 = vpack.c.b16 %v1352, %v1351
        %v1569 = vpack.c.b16 %v1354, %v1353
        %v1570 = vpack.c.b16 %v1356, %v1355
        %v1571 = vpack.c.b16 %v1358, %v1357
        %v1572 = vpack.c.b16 %v1360, %v1359
        %v1573 = vpack.c.b16 %v1362, %v1361
        %v1574 = vpack.c.b16 %v1364, %v1363
        %v1575 = vpack.c.b16 %v1366, %v1365
        %v1576 = vpack.c.b16 %v1368, %v1367
        %v1577 = vpack.c.b16 %v1370, %v1369
        %v1578 = vpack.c.b16 %v1372, %v1371
        %v1579 = vpack.c.b16 %v1374, %v1373
        %v1580 = vpack.c.b16 %v1376, %v1375
        %v1581 = vpack.c.b16 %v1378, %v1377
        %v1582 = vpack.c.b16 %v1380, %v1379
        %v1583 = vpack.c.b16 %v1382, %v1381
        %v1584 = vpack.c.b16 %v1384, %v1383
        %v1585 = vpack.c.b16 %v1386, %v1385
        %v1586 = vpack.c.b16 %v1388, %v1387
        %v1587 = vpack.c.b16 %v1390, %v1389
        %v1588 = vpack.c.b16 %v1392, %v1391
        %v1589 = vpack.c.b16 %v1394, %v1393
        %v1590 = vpack.c.b16 %v1396, %v1395
        %v1591 = vpack.c.b16 %v1398, %v1397
        %v1592 = vpack.c.b16 %v1400, %v1399
        %1785 = vmatpush.bf16.msra.mxu0 %v1408
        %1786 = vmatpush.bf16.msra.mxu0 %v1407
        %1787 = vmatpush.bf16.msra.mxu0 %v1406
        %1788 = vmatpush.bf16.msra.mxu0 %v1405
        %1789 = vmatpush.bf16.msra.mxu0 %v1404
        %1790 = vmatpush.bf16.msra.mxu0 %v1403
        %1791 = vmatpush.bf16.msra.mxu0 %v1402
        %1792 = vmatpush.bf16.msra.mxu0 %v1401
        %1793 = vmatmul.bf16.gmra.mxu0 %v225
        %v1794 = vpop.f32.mrf.mxu0
        %v1795 = vadd.f32 0.0, %v1794
        %v1796 = vpop.f32.mrf.mxu0
        %v1797 = vadd.f32 0.0, %v1796
        %1798 = vdwg.mxu0
        %1799 = vmatpush.bf16.msra.mxu0 %v1416
        %1800 = vmatpush.bf16.msra.mxu0 %v1415
        %1801 = vmatpush.bf16.msra.mxu0 %v1414
        %1802 = vmatpush.bf16.msra.mxu0 %v1413
        %1803 = vmatpush.bf16.msra.mxu0 %v1412
        %1804 = vmatpush.bf16.msra.mxu0 %v1411
        %1805 = vmatpush.bf16.msra.mxu0 %v1410
        %1806 = vmatpush.bf16.msra.mxu0 %v1409
        %1807 = vmatmul.bf16.gmra.mxu0 %v226
        %v1808 = vpop.f32.mrf.mxu0
        %v1809 = vadd.f32 %v1795, %v1808
        %v1810 = vpop.f32.mrf.mxu0
        %v1811 = vadd.f32 %v1797, %v1810
        %1812 = vdwg.mxu0
        %1813 = vmatpush.bf16.msra.mxu0 %v1424
        %1814 = vmatpush.bf16.msra.mxu0 %v1423
        %1815 = vmatpush.bf16.msra.mxu0 %v1422
        %1816 = vmatpush.bf16.msra.mxu0 %v1421
        %1817 = vmatpush.bf16.msra.mxu0 %v1420
        %1818 = vmatpush.bf16.msra.mxu0 %v1419
        %1819 = vmatpush.bf16.msra.mxu0 %v1418
        %1820 = vmatpush.bf16.msra.mxu0 %v1417
        %1821 = vmatmul.bf16.gmra.mxu0 %v227
        %v1822 = vpop.f32.mrf.mxu0
        %v1823 = vadd.f32 %v1809, %v1822
        %v1824 = vpop.f32.mrf.mxu0
        %v1825 = vadd.f32 %v1811, %v1824
        %1826 = vdwg.mxu0
        %1827 = vmatpush.bf16.msra.mxu0 %v1432
        %1828 = vmatpush.bf16.msra.mxu0 %v1431
        %1829 = vmatpush.bf16.msra.mxu0 %v1430
        %1830 = vmatpush.bf16.msra.mxu0 %v1429
        %1831 = vmatpush.bf16.msra.mxu0 %v1428
        %1832 = vmatpush.bf16.msra.mxu0 %v1427
        %1833 = vmatpush.bf16.msra.mxu0 %v1426
        %1834 = vmatpush.bf16.msra.mxu0 %v1425
        %1835 = vmatmul.bf16.gmra.mxu0 %v228
        %v1836 = vpop.f32.mrf.mxu0
        %v1837 = vadd.f32 %v1823, %v1836
        %v1838 = vpop.f32.mrf.mxu0
        %v1839 = vadd.f32 %v1825, %v1838
        %1840 = vdwg.mxu0
        %1841 = vmatpush.bf16.msra.mxu0 %v1440
        %1842 = vmatpush.bf16.msra.mxu0 %v1439
        %1843 = vmatpush.bf16.msra.mxu0 %v1438
        %1844 = vmatpush.bf16.msra.mxu0 %v1437
        %1845 = vmatpush.bf16.msra.mxu0 %v1436
        %1846 = vmatpush.bf16.msra.mxu0 %v1435
        %1847 = vmatpush.bf16.msra.mxu0 %v1434
        %1848 = vmatpush.bf16.msra.mxu0 %v1433
        %1849 = vmatmul.bf16.gmra.mxu0 %v229
        %v1850 = vpop.f32.mrf.mxu0
        %v1851 = vadd.f32 %v1837, %v1850
        %v1852 = vpop.f32.mrf.mxu0
        %v1853 = vadd.f32 %v1839, %v1852
        %1854 = vdwg.mxu0
        %1855 = vmatpush.bf16.msra.mxu0 %v1448
        %1856 = vmatpush.bf16.msra.mxu0 %v1447
        %1857 = vmatpush.bf16.msra.mxu0 %v1446
        %1858 = vmatpush.bf16.msra.mxu0 %v1445
        %1859 = vmatpush.bf16.msra.mxu0 %v1444
        %1860 = vmatpush.bf16.msra.mxu0 %v1443
        %1861 = vmatpush.bf16.msra.mxu0 %v1442
        %1862 = vmatpush.bf16.msra.mxu0 %v1441
        %1863 = vmatmul.bf16.gmra.mxu0 %v230
        %v1864 = vpop.f32.mrf.mxu0
        %v1865 = vadd.f32 %v1851, %v1864
        %v1866 = vpop.f32.mrf.mxu0
        %v1867 = vadd.f32 %v1853, %v1866
        %1868 = vdwg.mxu0
        %1869 = vmatpush.bf16.msra.mxu0 %v1456
        %1870 = vmatpush.bf16.msra.mxu0 %v1455
        %1871 = vmatpush.bf16.msra.mxu0 %v1454
        %1872 = vmatpush.bf16.msra.mxu0 %v1453
        %1873 = vmatpush.bf16.msra.mxu0 %v1452
        %1874 = vmatpush.bf16.msra.mxu0 %v1451
        %1875 = vmatpush.bf16.msra.mxu0 %v1450
        %1876 = vmatpush.bf16.msra.mxu0 %v1449
        %1877 = vmatmul.bf16.gmra.mxu0 %v231
        %v1878 = vpop.f32.mrf.mxu0
        %v1879 = vadd.f32 %v1865, %v1878
        %v1880 = vpop.f32.mrf.mxu0
        %v1881 = vadd.f32 %v1867, %v1880
        %1882 = vdwg.mxu0
        %1883 = vmatpush.bf16.msra.mxu0 %v1464
        %1884 = vmatpush.bf16.msra.mxu0 %v1463
        %1885 = vmatpush.bf16.msra.mxu0 %v1462
        %1886 = vmatpush.bf16.msra.mxu0 %v1461
        %1887 = vmatpush.bf16.msra.mxu0 %v1460
        %1888 = vmatpush.bf16.msra.mxu0 %v1459
        %1889 = vmatpush.bf16.msra.mxu0 %v1458
        %1890 = vmatpush.bf16.msra.mxu0 %v1457
        %1891 = vmatmul.bf16.gmra.mxu0 %v232
        %v1892 = vpop.f32.mrf.mxu0
        %v1893 = vadd.f32 %v1879, %v1892
        %v1894 = vpop.f32.mrf.mxu0
        %v1895 = vadd.f32 %v1881, %v1894
        %1896 = vdwg.mxu0
        %1897 = vmatpush.bf16.msra.mxu0 %v1472
        %1898 = vmatpush.bf16.msra.mxu0 %v1471
        %1899 = vmatpush.bf16.msra.mxu0 %v1470
        %1900 = vmatpush.bf16.msra.mxu0 %v1469
        %1901 = vmatpush.bf16.msra.mxu0 %v1468
        %1902 = vmatpush.bf16.msra.mxu0 %v1467
        %1903 = vmatpush.bf16.msra.mxu0 %v1466
        %1904 = vmatpush.bf16.msra.mxu0 %v1465
        %1905 = vmatmul.bf16.gmra.mxu0 %v233
        %v1906 = vpop.f32.mrf.mxu0
        %v1907 = vadd.f32 %v1893, %v1906
        %v1908 = vpop.f32.mrf.mxu0
        %v1909 = vadd.f32 %v1895, %v1908
        %1910 = vdwg.mxu0
        %1911 = vmatpush.bf16.msra.mxu0 %v1480
        %1912 = vmatpush.bf16.msra.mxu0 %v1479
        %1913 = vmatpush.bf16.msra.mxu0 %v1478
        %1914 = vmatpush.bf16.msra.mxu0 %v1477
        %1915 = vmatpush.bf16.msra.mxu0 %v1476
        %1916 = vmatpush.bf16.msra.mxu0 %v1475
        %1917 = vmatpush.bf16.msra.mxu0 %v1474
        %1918 = vmatpush.bf16.msra.mxu0 %v1473
        %1919 = vmatmul.bf16.gmra.mxu0 %v234
        %v1920 = vpop.f32.mrf.mxu0
        %v1921 = vadd.f32 %v1907, %v1920
        %v1922 = vpop.f32.mrf.mxu0
        %v1923 = vadd.f32 %v1909, %v1922
        %1924 = vdwg.mxu0
        %1925 = vmatpush.bf16.msra.mxu0 %v1488
        %1926 = vmatpush.bf16.msra.mxu0 %v1487
        %1927 = vmatpush.bf16.msra.mxu0 %v1486
        %1928 = vmatpush.bf16.msra.mxu0 %v1485
        %1929 = vmatpush.bf16.msra.mxu0 %v1484
        %1930 = vmatpush.bf16.msra.mxu0 %v1483
        %1931 = vmatpush.bf16.msra.mxu0 %v1482
        %1932 = vmatpush.bf16.msra.mxu0 %v1481
        %1933 = vmatmul.bf16.gmra.mxu0 %v235
        %v1934 = vpop.f32.mrf.mxu0
        %v1935 = vadd.f32 %v1921, %v1934
        %v1936 = vpop.f32.mrf.mxu0
        %v1937 = vadd.f32 %v1923, %v1936
        %1938 = vdwg.mxu0
        %1939 = vmatpush.bf16.msra.mxu0 %v1496
        %1940 = vmatpush.bf16.msra.mxu0 %v1495
        %1941 = vmatpush.bf16.msra.mxu0 %v1494
        %1942 = vmatpush.bf16.msra.mxu0 %v1493
        %1943 = vmatpush.bf16.msra.mxu0 %v1492
        %1944 = vmatpush.bf16.msra.mxu0 %v1491
        %1945 = vmatpush.bf16.msra.mxu0 %v1490
        %1946 = vmatpush.bf16.msra.mxu0 %v1489
        %1947 = vmatmul.bf16.gmra.mxu0 %v236
        %v1948 = vpop.f32.mrf.mxu0
        %v1949 = vadd.f32 %v1935, %v1948
        %v1950 = vpop.f32.mrf.mxu0
        %v1951 = vadd.f32 %v1937, %v1950
        %1952 = vdwg.mxu0
        %1953 = vmatpush.bf16.msra.mxu0 %v1504
        %1954 = vmatpush.bf16.msra.mxu0 %v1503
        %1955 = vmatpush.bf16.msra.mxu0 %v1502
        %1956 = vmatpush.bf16.msra.mxu0 %v1501
        %1957 = vmatpush.bf16.msra.mxu0 %v1500
        %1958 = vmatpush.bf16.msra.mxu0 %v1499
        %1959 = vmatpush.bf16.msra.mxu0 %v1498
        %1960 = vmatpush.bf16.msra.mxu0 %v1497
        %1961 = vmatmul.bf16.gmra.mxu0 %v237
        %v1962 = vpop.f32.mrf.mxu0
        %v1963 = vadd.f32 %v1949, %v1962
        %v1964 = vpop.f32.mrf.mxu0
        %v1965 = vadd.f32 %v1951, %v1964
        %1966 = vdwg.mxu0
        %1967 = vmatpush.bf16.msra.mxu0 %v1512
        %1968 = vmatpush.bf16.msra.mxu0 %v1511
        %1969 = vmatpush.bf16.msra.mxu0 %v1510
        %1970 = vmatpush.bf16.msra.mxu0 %v1509
        %1971 = vmatpush.bf16.msra.mxu0 %v1508
        %1972 = vmatpush.bf16.msra.mxu0 %v1507
        %1973 = vmatpush.bf16.msra.mxu0 %v1506
        %1974 = vmatpush.bf16.msra.mxu0 %v1505
        %1975 = vmatmul.bf16.gmra.mxu0 %v238
        %v1976 = vpop.f32.mrf.mxu0
        %v1977 = vadd.f32 %v1963, %v1976
        %v1978 = vpop.f32.mrf.mxu0
        %v1979 = vadd.f32 %v1965, %v1978
        %1980 = vdwg.mxu0
        %1981 = vmatpush.bf16.msra.mxu0 %v1520
        %1982 = vmatpush.bf16.msra.mxu0 %v1519
        %1983 = vmatpush.bf16.msra.mxu0 %v1518
        %1984 = vmatpush.bf16.msra.mxu0 %v1517
        %1985 = vmatpush.bf16.msra.mxu0 %v1516
        %1986 = vmatpush.bf16.msra.mxu0 %v1515
        %1987 = vmatpush.bf16.msra.mxu0 %v1514
        %1988 = vmatpush.bf16.msra.mxu0 %v1513
        %1989 = vmatmul.bf16.gmra.mxu0 %v239
        %v1990 = vpop.f32.mrf.mxu0
        %v1991 = vadd.f32 %v1977, %v1990
        %v1992 = vpop.f32.mrf.mxu0
        %v1993 = vadd.f32 %v1979, %v1992
        %1994 = vdwg.mxu0
        %1995 = vmatpush.bf16.msra.mxu0 %v1528
        %1996 = vmatpush.bf16.msra.mxu0 %v1527
        %1997 = vmatpush.bf16.msra.mxu0 %v1526
        %1998 = vmatpush.bf16.msra.mxu0 %v1525
        %1999 = vmatpush.bf16.msra.mxu0 %v1524
        %2000 = vmatpush.bf16.msra.mxu0 %v1523
        %2001 = vmatpush.bf16.msra.mxu0 %v1522
        %2002 = vmatpush.bf16.msra.mxu0 %v1521
        %2003 = vmatmul.bf16.gmra.mxu0 %v240
        %v2004 = vpop.f32.mrf.mxu0
        %v2005 = vadd.f32 %v1991, %v2004
        %v2006 = vpop.f32.mrf.mxu0
        %v2007 = vadd.f32 %v1993, %v2006
        %2008 = vdwg.mxu0
        %2009 = vmatpush.bf16.msra.mxu0 %v1536
        %2010 = vmatpush.bf16.msra.mxu0 %v1535
        %2011 = vmatpush.bf16.msra.mxu0 %v1534
        %2012 = vmatpush.bf16.msra.mxu0 %v1533
        %2013 = vmatpush.bf16.msra.mxu0 %v1532
        %2014 = vmatpush.bf16.msra.mxu0 %v1531
        %2015 = vmatpush.bf16.msra.mxu0 %v1530
        %2016 = vmatpush.bf16.msra.mxu0 %v1529
        %2017 = vmatmul.bf16.gmra.mxu0 %v241
        %v2018 = vpop.f32.mrf.mxu0
        %v2019 = vadd.f32 %v2005, %v2018
        %v2020 = vpop.f32.mrf.mxu0
        %v2021 = vadd.f32 %v2007, %v2020
        %2022 = vdwg.mxu0
        %2023 = vmatpush.bf16.msra.mxu0 %v1544
        %2024 = vmatpush.bf16.msra.mxu0 %v1543
        %2025 = vmatpush.bf16.msra.mxu0 %v1542
        %2026 = vmatpush.bf16.msra.mxu0 %v1541
        %2027 = vmatpush.bf16.msra.mxu0 %v1540
        %2028 = vmatpush.bf16.msra.mxu0 %v1539
        %2029 = vmatpush.bf16.msra.mxu0 %v1538
        %2030 = vmatpush.bf16.msra.mxu0 %v1537
        %2031 = vmatmul.bf16.gmra.mxu0 %v242
        %v2032 = vpop.f32.mrf.mxu0
        %v2033 = vadd.f32 %v2019, %v2032
        %v2034 = vpop.f32.mrf.mxu0
        %v2035 = vadd.f32 %v2021, %v2034
        %2036 = vdwg.mxu0
        %2037 = vmatpush.bf16.msra.mxu0 %v1552
        %2038 = vmatpush.bf16.msra.mxu0 %v1551
        %2039 = vmatpush.bf16.msra.mxu0 %v1550
        %2040 = vmatpush.bf16.msra.mxu0 %v1549
        %2041 = vmatpush.bf16.msra.mxu0 %v1548
        %2042 = vmatpush.bf16.msra.mxu0 %v1547
        %2043 = vmatpush.bf16.msra.mxu0 %v1546
        %2044 = vmatpush.bf16.msra.mxu0 %v1545
        %2045 = vmatmul.bf16.gmra.mxu0 %v243
        %v2046 = vpop.f32.mrf.mxu0
        %v2047 = vadd.f32 %v2033, %v2046
        %v2048 = vpop.f32.mrf.mxu0
        %v2049 = vadd.f32 %v2035, %v2048
        %2050 = vdwg.mxu0
        %2051 = vmatpush.bf16.msra.mxu0 %v1560
        %2052 = vmatpush.bf16.msra.mxu0 %v1559
        %2053 = vmatpush.bf16.msra.mxu0 %v1558
        %2054 = vmatpush.bf16.msra.mxu0 %v1557
        %2055 = vmatpush.bf16.msra.mxu0 %v1556
        %2056 = vmatpush.bf16.msra.mxu0 %v1555
        %2057 = vmatpush.bf16.msra.mxu0 %v1554
        %2058 = vmatpush.bf16.msra.mxu0 %v1553
        %2059 = vmatmul.bf16.gmra.mxu0 %v244
        %v2060 = vpop.f32.mrf.mxu0
        %v2061 = vadd.f32 %v2047, %v2060
        %v2062 = vpop.f32.mrf.mxu0
        %v2063 = vadd.f32 %v2049, %v2062
        %2064 = vdwg.mxu0
        %2065 = vmatpush.bf16.msra.mxu0 %v1568
        %2066 = vmatpush.bf16.msra.mxu0 %v1567
        %2067 = vmatpush.bf16.msra.mxu0 %v1566
        %2068 = vmatpush.bf16.msra.mxu0 %v1565
        %2069 = vmatpush.bf16.msra.mxu0 %v1564
        %2070 = vmatpush.bf16.msra.mxu0 %v1563
        %2071 = vmatpush.bf16.msra.mxu0 %v1562
        %2072 = vmatpush.bf16.msra.mxu0 %v1561
        %2073 = vmatmul.bf16.gmra.mxu0 %v245
        %v2074 = vpop.f32.mrf.mxu0
        %v2075 = vadd.f32 %v2061, %v2074
        %v2076 = vpop.f32.mrf.mxu0
        %v2077 = vadd.f32 %v2063, %v2076
        %2078 = vdwg.mxu0
        %2079 = vmatpush.bf16.msra.mxu0 %v1576
        %2080 = vmatpush.bf16.msra.mxu0 %v1575
        %2081 = vmatpush.bf16.msra.mxu0 %v1574
        %2082 = vmatpush.bf16.msra.mxu0 %v1573
        %2083 = vmatpush.bf16.msra.mxu0 %v1572
        %2084 = vmatpush.bf16.msra.mxu0 %v1571
        %2085 = vmatpush.bf16.msra.mxu0 %v1570
        %2086 = vmatpush.bf16.msra.mxu0 %v1569
        %2087 = vmatmul.bf16.gmra.mxu0 %v246
        %v2088 = vpop.f32.mrf.mxu0
        %v2089 = vadd.f32 %v2075, %v2088
        %v2090 = vpop.f32.mrf.mxu0
        %v2091 = vadd.f32 %v2077, %v2090
        %2092 = vdwg.mxu0
        %2093 = vmatpush.bf16.msra.mxu0 %v1584
        %2094 = vmatpush.bf16.msra.mxu0 %v1583
        %2095 = vmatpush.bf16.msra.mxu0 %v1582
        %2096 = vmatpush.bf16.msra.mxu0 %v1581
        %2097 = vmatpush.bf16.msra.mxu0 %v1580
        %2098 = vmatpush.bf16.msra.mxu0 %v1579
        %2099 = vmatpush.bf16.msra.mxu0 %v1578
        %2100 = vmatpush.bf16.msra.mxu0 %v1577
        %2101 = vmatmul.bf16.gmra.mxu0 %v247
        %v2102 = vpop.f32.mrf.mxu0
        %v2103 = vadd.f32 %v2089, %v2102
        %v2104 = vpop.f32.mrf.mxu0
        %v2105 = vadd.f32 %v2091, %v2104
        %2106 = vdwg.mxu0
        %2107 = vmatpush.bf16.msra.mxu0 %v1592
        %2108 = vmatpush.bf16.msra.mxu0 %v1591
        %2109 = vmatpush.bf16.msra.mxu0 %v1590
        %2110 = vmatpush.bf16.msra.mxu0 %v1589
        %2111 = vmatpush.bf16.msra.mxu0 %v1588
        %2112 = vmatpush.bf16.msra.mxu0 %v1587
        %2113 = vmatpush.bf16.msra.mxu0 %v1586
        %2114 = vmatpush.bf16.msra.mxu0 %v1585
        %2115 = vmatmul.bf16.gmra.mxu0 %v248
        %v2116 = vpop.f32.mrf.mxu0
        %v2117 = vadd.f32 %v2103, %v2116
        %v2118 = vpop.f32.mrf.mxu0
        %v2119 = vadd.f32 %v2105, %v2118
        %2120 = vdwg.mxu0
        %s2121 = sld [smem:[#allocation3]]
        %v2122 = vmul.f32 %v2117, %v2117
        %v2123 = vmul.f32 %v2119, %v2119
        %2124 = vadd.xlane.f32.xlu0 %v2122
        %v2125 = vpop.xlane.xlu0 %2124
        %2126 = vadd.xlane.f32.xlu0 %v2123
        %v2127 = vpop.xlane.xlu0 %2126
        %v2128 = vmax.f32 %v2125, 1e-24
        %v2129 = vmax.f32 %v2127, 1e-24
        %v2130 = vrsqrt.pop %v2128
        %v2131 = vmul.f32 %v2130, %v2128
        %v2132 = vmul.f32 %v2131, %v2130
        %v2133 = vmul.f32 0.5, %v2132
        %v2134 = vsub.f32 1.5, %v2133
        %v2135 = vmul.f32 %v2130, %v2134
        %vm2136 = vweird.f32 %v2128
        %vm2137 = vweird.f32 %v2130
        %vm2138 = vmor %vm2136, %vm2137
        %v2139 = vsel %vm2138, %v2130, %v2135
        %v2140 = vrsqrt.pop %v2129
        %v2141 = vmul.f32 %v2140, %v2129
        %v2142 = vmul.f32 %v2141, %v2140
        %v2143 = vmul.f32 0.5, %v2142
        %v2144 = vsub.f32 1.5, %v2143
        %v2145 = vmul.f32 %v2140, %v2144
        %vm2146 = vweird.f32 %v2129
        %vm2147 = vweird.f32 %v2140
        %vm2148 = vmor %vm2146, %vm2147
        %v2149 = vsel %vm2148, %v2140, %v2145
        %v2150 = vstv %s2121
        %v2151 = vmul.f32 %v2150, %v2139
        %v2152 = vmul.f32 %v2150, %v2149
        %v2153 = vmul.f32 %v2117, %v2151
        %v2154 = vmul.f32 %v2119, %v2152
        %v2155 = vpack.c.bf16 %v2154, %v2153
        %v2156 = vld [vmem:[%s3] sm:$0xff]
        %v2157 = vld [vmem:[%s3 + $0x8] sm:$0xff]
        %v2158 = vld [vmem:[%s3 + $0x10] sm:$0xff]
        %v2159 = vld [vmem:[%s3 + $0x18] sm:$0xff]
        %v2160 = vld [vmem:[%s3 + $0x20] sm:$0xff]
        %v2161 = vld [vmem:[%s3 + $0x28] sm:$0xff]
        %v2162 = vld [vmem:[%s3 + $0x30] sm:$0xff]
        %v2163 = vld [vmem:[%s3 + $0x38] sm:$0xff]
        %v2164 = vld [vmem:[%s3 + $0x40] sm:$0xff]
        %v2165 = vld [vmem:[%s3 + $0x48] sm:$0xff]
        %v2166 = vld [vmem:[%s3 + $0x50] sm:$0xff]
        %v2167 = vld [vmem:[%s3 + $0x58] sm:$0xff]
        %v2168 = vld [vmem:[%s3 + $0x60] sm:$0xff]
        %v2169 = vld [vmem:[%s3 + $0x68] sm:$0xff]
        %v2170 = vld [vmem:[%s3 + $0x70] sm:$0xff]
        %v2171 = vld [vmem:[%s3 + $0x78] sm:$0xff]
        %v2188 = vunpack.c.l.b16 %v2156
        %v2189 = vunpack.c.h.b16 %v2156
        %v2190 = vunpack.c.l.b16 %v2157
        %v2191 = vunpack.c.h.b16 %v2157
        %v2192 = vunpack.c.l.b16 %v2158
        %v2193 = vunpack.c.h.b16 %v2158
        %v2194 = vunpack.c.l.b16 %v2159
        %v2195 = vunpack.c.h.b16 %v2159
        %v2196 = vunpack.c.l.b16 %v2160
        %v2197 = vunpack.c.h.b16 %v2160
        %v2198 = vunpack.c.l.b16 %v2161
        %v2199 = vunpack.c.h.b16 %v2161
        %v2200 = vunpack.c.l.b16 %v2162
        %v2201 = vunpack.c.h.b16 %v2162
        %v2202 = vunpack.c.l.b16 %v2163
        %v2203 = vunpack.c.h.b16 %v2163
        %v2204 = vunpack.c.l.b16 %v2164
        %v2205 = vunpack.c.h.b16 %v2164
        %v2206 = vunpack.c.l.b16 %v2165
        %v2207 = vunpack.c.h.b16 %v2165
        %v2208 = vunpack.c.l.b16 %v2166
        %v2209 = vunpack.c.h.b16 %v2166
        %v2210 = vunpack.c.l.b16 %v2167
        %v2211 = vunpack.c.h.b16 %v2167
        %v2212 = vunpack.c.l.b16 %v2168
        %v2213 = vunpack.c.h.b16 %v2168
        %v2214 = vunpack.c.l.b16 %v2169
        %v2215 = vunpack.c.h.b16 %v2169
        %v2216 = vunpack.c.l.b16 %v2170
        %v2217 = vunpack.c.h.b16 %v2170
        %v2218 = vunpack.c.l.b16 %v2171
        %v2219 = vunpack.c.h.b16 %v2171
        %v2220 = vpack.c.b16 %v2190, %v2188
        %v2221 = vpack.c.b16 %v2191, %v2189
        %v2222 = vpack.c.b16 %v2194, %v2192
        %v2223 = vpack.c.b16 %v2195, %v2193
        %v2224 = vpack.c.b16 %v2198, %v2196
        %v2225 = vpack.c.b16 %v2199, %v2197
        %v2226 = vpack.c.b16 %v2202, %v2200
        %v2227 = vpack.c.b16 %v2203, %v2201
        %v2228 = vpack.c.b16 %v2206, %v2204
        %v2229 = vpack.c.b16 %v2207, %v2205
        %v2230 = vpack.c.b16 %v2210, %v2208
        %v2231 = vpack.c.b16 %v2211, %v2209
        %v2232 = vpack.c.b16 %v2214, %v2212
        %v2233 = vpack.c.b16 %v2215, %v2213
        %v2234 = vpack.c.b16 %v2218, %v2216
        %v2235 = vpack.c.b16 %v2219, %v2217
        %2252 = vmatpush.bf16.msra.mxu0 %v2234
        %2253 = vmatpush.bf16.msra.mxu0 %v2232
        %2254 = vmatpush.bf16.msra.mxu0 %v2230
        %2255 = vmatpush.bf16.msra.mxu0 %v2228
        %2256 = vmatpush.bf16.msra.mxu0 %v2226
        %2257 = vmatpush.bf16.msra.mxu0 %v2224
        %2258 = vmatpush.bf16.msra.mxu0 %v2222
        %2259 = vmatpush.bf16.msra.mxu0 %v2220
        %2260 = vmatmul.bf16.gmra.mxu0 %v2155
        %v2261 = vpop.f32.mrf.mxu0
        %v2262 = vadd.f32 0.0, %v2261
        %v2263 = vpop.f32.mrf.mxu0
        %v2264 = vadd.f32 0.0, %v2263
        %2265 = vdwg.mxu0
        %2266 = vmatpush.bf16.msra.mxu0 %v2235
        %2267 = vmatpush.bf16.msra.mxu0 %v2233
        %2268 = vmatpush.bf16.msra.mxu0 %v2231
        %2269 = vmatpush.bf16.msra.mxu0 %v2229
        %2270 = vmatpush.bf16.msra.mxu0 %v2227
        %2271 = vmatpush.bf16.msra.mxu0 %v2225
        %2272 = vmatpush.bf16.msra.mxu0 %v2223
        %2273 = vmatpush.bf16.msra.mxu0 %v2221
        %2274 = vmatmul.bf16.gmra.mxu0 %v2155
        %v2275 = vpop.f32.mrf.mxu0
        %v2276 = vadd.f32 0.0, %v2275
        %v2277 = vpop.f32.mrf.mxu0
        %v2278 = vadd.f32 0.0, %v2277
        %2279 = vdwg.mxu0
        %v2280 = vmax.f32 %v2262, %v2276
        %2281 = vmax.xlane.f32.xlu0 %v2280
        %v2282 = vpop.xlane.xlu0 %2281
        %v2283 = vmax.f32 %v2264, %v2278
        %2284 = vmax.xlane.f32.xlu0 %v2283
        %v2285 = vpop.xlane.xlu0 %2284
        %v2286 = vsub.f32 %v2262, %v2282
        %v2287 = vsub.f32 %v2276, %v2282
        %v2288 = vsub.f32 %v2264, %v2285
        %v2289 = vsub.f32 %v2278, %v2285
        %v2290 = vmul.f32 %v2286, 1.442695
        %v2291 = vpow.pop %v2290
        %v2292 = vmul.f32 %v2287, 1.442695
        %v2293 = vpow.pop %v2292
        %v2294 = vmul.f32 %v2288, 1.442695
        %v2295 = vpow.pop %v2294
        %v2296 = vmul.f32 %v2289, 1.442695
        %v2297 = vpow.pop %v2296
        %v2298 = vadd.f32 %v2291, %v2293
        %2299 = vadd.xlane.f32.xlu0 %v2298
        %v2300 = vpop.xlane.xlu0 %2299
        %v2301 = vadd.f32 %v2295, %v2297
        %2302 = vadd.xlane.f32.xlu0 %v2301
        %v2303 = vpop.xlane.xlu0 %2302
        %v2304 = vrcp.pop %v2300
        %v2305 = vmul.f32 %v2300, %v2304
        %v2306 = vsub.f32 1.0, %v2305
        %v2307 = vmul.f32 %v2304, %v2306
        %v2308 = vadd.f32 %v2304, %v2307
        %vm2309 = vweird.f32 %v2300
        %vm2310 = vweird.f32 %v2304
        %vm2311 = vmor %vm2309, %vm2310
        %v2312 = vsel %vm2311, %v2304, %v2308
        %v2313 = vand.u32 2147483647, %v2300
        %vm2314 = vcmp.eq.f32.partialorder %v2313, 8.507059e+37
        %v2315 = vand.u32 %v2300, 2147483648
        %v2316 = vor.u32 1.1754944e-38, %v2315
        %v2317 = vsel %vm2314, %v2316, %v2312
        %v2318 = vmul.f32 %v2291, %v2317
        %v2319 = vmul.f32 %v2293, %v2317
        %v2320 = vrcp.pop %v2303
        %v2321 = vmul.f32 %v2303, %v2320
        %v2322 = vsub.f32 1.0, %v2321
        %v2323 = vmul.f32 %v2320, %v2322
        %v2324 = vadd.f32 %v2320, %v2323
        %vm2325 = vweird.f32 %v2303
        %vm2326 = vweird.f32 %v2320
        %vm2327 = vmor %vm2325, %vm2326
        %v2328 = vsel %vm2327, %v2320, %v2324
        %v2329 = vand.u32 2147483647, %v2303
        %vm2330 = vcmp.eq.f32.partialorder %v2329, 8.507059e+37
        %v2331 = vand.u32 %v2303, 2147483648
        %v2332 = vor.u32 1.1754944e-38, %v2331
        %v2333 = vsel %vm2330, %v2332, %v2328
        %v2334 = vmul.f32 %v2295, %v2333
        %v2335 = vmul.f32 %v2297, %v2333
        %2336 = vst [vmem:[%s168] sm:$0xff] %v2318
        %2337 = vst [vmem:[%s168 + $0x8] sm:$0xff] %v2319
        %2338 = vst [vmem:[%s168 + $0x10] sm:$0xff] %v2334
        %2339 = vst [vmem:[%s168 + $0x18] sm:$0xff] %v2335
        %s2340 = sand.u32 %s95, 1
        %s2341 = scalar_lea.sflag [#allocation5], %s2340
        %s2342 = sand.u32 %s95, 1
        %s2343 = smul.addr %s2342, 32
        %s2344 = scalar_lea.vmem [#allocation4], %s2343
        // Predicated region
        $region33: #{base_classifier_forward.1} parent=31 // pred_check
          %p2345 = pneg %p105
        $region34: #{base_classifier_forward.1} parent=31 // pred_check_branch
          %2347 = sbr.rel (%p2345) target = $region36
        $region35: #{base_classifier_forward.1} parent=31 // pred_region
          %s2348 = smul.u32 2, %s19
          %2350 = vsyncadd %s2341, 0
          %s2351 = smul.addr %s2348, 2
          %s2352 = smul.addr %s2351, 8
          %s2353 = scalar_lea.hbm %s4, %s2352
          %s2354 = sshll.u32 %s2344, 4
          %s2355 = int_to_ptr.vmem [resolvable:$true] %s2354
          %s2356 = sshll.u32 %s2353, 4
          %s2357 = int_to_ptr.hbm [resolvable:$true] %s2356
          %2362 = dma.vmem_to_hbm [thread:$0]  %s2355, 512, %s2357, %s2341, 256, 256, 16
        $region36: #{base_classifier_forward.1} parent=31 // pred_fallthru
          _
      $region32: #{base_classifier_forward.1} parent=5 // pred_fallthru
        _
      %p2363 = scmp.le.s32.totalorder 2, %s14
      // Predicated region
      $region37: #{base_classifier_forward.1} parent=5 // pred_check
        %p2364 = pneg %p2363
      $region38: #{base_classifier_forward.1} parent=5 // pred_check_branch
        %2366 = sbr.rel (%p2364) target = $region40
      $region39: #{base_classifier_forward.1} parent=5 // pred_region
        %s2367 = ssub.s32 %s14, 2
        // Predicated region
        $region41: #{base_classifier_forward.1} parent=39 // pred_check
          %p2368 = pneg %p111
        $region42: #{base_classifier_forward.1} parent=39 // pred_check_branch
          %2370 = sbr.rel (%p2368) target = $region44
        $region43: #{base_classifier_forward.1} parent=39 // pred_region
          %s2371 = sand.u32 %s96, 1
          %s2372 = scalar_lea.sflag [#allocation5], %s2371
          %s2373 = sand.u32 %s96, 1
          %s2374 = smul.addr %s2373, 32
          %s2375 = scalar_lea.vmem [#allocation4], %s2374
          %2377 = dma.done %s2372, 512
        $region44: #{base_classifier_forward.1} parent=39 // pred_fallthru
          _
      $region40: #{base_classifier_forward.1} parent=5 // pred_fallthru
        _
    $region6: #{base_classifier_forward.1} parent=1 // loop_footer
      %s18 = sadd.s32 1, %s14
    $region7: #{base_classifier_forward.1} parent=1 // loop_footer_branch
      %13 = sbr.rel target = $region3
    $region8: #{base_classifier_forward.1} parent=1 // loop_exit
      _
    %2378 = vsyncpa [#allocation5], 1
    %s2379 = scalar_lea.sflag [#allocation5], 1
    %2380 = vsyncpa %s2379, 1

</llo_original>
